<compile_context>
chip_gen: v7x
topology: tpu7x:2x2x1
jax: 0.10.0
libtpu: 0.0.40
codegen_flags: <defaults>
</compile_context>

<pallas_src>
import functools

import jax
import jax.numpy as jnp
from jax.experimental import pallas as pl
from jax.experimental.pallas import tpu as pltpu


def actor_kernel(x_ref, h0_ref,
                 w1_ref, b1_ref,
                 wih_ref, bih_ref,
                 whh_ref, bhh_ref,
                 w3_ref, b3_ref,
                 logits_ref, hout_ref,
                 *, T, Bp, H):
    # ---- Non-recurrent work, hoisted out of the time loop -----------------
    # fc1 + tanh for all timesteps at once: (T*Bp, Din) @ (Din, H)
    a = jnp.tanh(
        jnp.dot(x_ref[...], w1_ref[...], preferred_element_type=jnp.float32)
        + b1_ref[...])                                              # (T*Bp, H)

    # Input-side GRU gate projections for all timesteps, one fused matmul.
    # Columns laid out [r | z | n] (PyTorch gate order).
    gi = (jnp.dot(a, wih_ref[...], preferred_element_type=jnp.float32)
          + bih_ref[...])                                           # (T*Bp, 3H)

    whh = whh_ref[...]                                              # (H, 3H), loaded once
    bhh = bhh_ref[...]                                              # (1, 3H)

    # ---- Serial recurrence: one fused (Bp,H)@(H,3H) matmul per step --------
    # Bp is a multiple of 8, so every row slice below is sublane-aligned.
    h = h0_ref[...].astype(jnp.float32)                             # (Bp, H)
    hs_list = []
    for t in range(T):                                              # T static & tiny
        gi_t = gi[t * Bp:(t + 1) * Bp, :]                           # (Bp, 3H), aligned
        gh = jnp.dot(h, whh, preferred_element_type=jnp.float32) + bhh
        r = jax.nn.sigmoid(gi_t[:, :H] + gh[:, :H])
        z = jax.nn.sigmoid(gi_t[:, H:2 * H] + gh[:, H:2 * H])
        n = jnp.tanh(gi_t[:, 2 * H:] + r * gh[:, 2 * H:])
        h = (1.0 - z) * n + z * h
        hs_list.append(h)

    hs = jnp.concatenate(hs_list, axis=0)                           # (T*Bp, H), in vregs

    # ---- fc3 once over all timesteps, single output store ------------------
    logits_ref[...] = (
        jnp.dot(hs, w3_ref[...], preferred_element_type=jnp.float32)
        + b3_ref[...]).astype(logits_ref.dtype)
    hout_ref[...] = h.astype(hout_ref.dtype)


def _actor_forward_impl(x, h0, params):
    """x: (B, T, Din) f32, h0: (1, B, H) f32 -> (logits (B,T,A), h (1,B,H))."""
    B, T, Din = x.shape
    H = params["w1"].shape[0]
    A = params["w3"].shape[0]
    Bp = ((B + 7) // 8) * 8                              # pad batch to full sublane tile

    # Time-major, flattened rows: row t*Bp + b == (timestep t, batch b).
    x_tm = jnp.transpose(x, (1, 0, 2))                   # (T, B, Din)
    x_tm = jnp.pad(x_tm, ((0, 0), (0, Bp - B), (0, 0))).reshape(T * Bp, Din)
    h0_2d = jnp.pad(h0[0], ((0, Bp - B), (0, 0)))        # (Bp, H)

    # Pre-transpose weights to (in, out); keep GRU gates fused as (H, 3H).
    w1t = params["w1"].T                                 # (Din, H)
    b1 = params["b1"].reshape(1, H)
    wih_cat = params["w_ih"].T                           # (H, 3H)  cols [r|z|n]
    whh_cat = params["w_hh"].T                           # (H, 3H)
    bih = params["b_ih"].reshape(1, 3 * H)
    bhh = params["b_hh"].reshape(1, 3 * H)
    w3t = params["w3"].T                                 # (H, A)
    b3 = params["b3"].reshape(1, A)

    kernel = functools.partial(actor_kernel, T=T, Bp=Bp, H=H)
    vmem_spec = pl.BlockSpec(memory_space=pltpu.MemorySpace.VMEM)

    logits_flat, h_last = pl.pallas_call(
        kernel,
        out_shape=(
            jax.ShapeDtypeStruct((T * Bp, A), jnp.float32),
            jax.ShapeDtypeStruct((Bp, H), jnp.float32),
        ),
        in_specs=[vmem_spec] * 10,
        out_specs=(vmem_spec, vmem_spec),
    )(x_tm, h0_2d,
      w1t, b1,
      wih_cat, bih,
      whh_cat, bhh,
      w3t, b3)

    # (T*Bp, A) -> (B, T, A): drop padded rows, one transpose.
    logits = jnp.transpose(logits_flat.reshape(T, Bp, A)[:, :B, :], (1, 0, 2))
    return logits, h_last[:B][None]                      # (B,T,A), (1,B,H)


actor_forward = jax.jit(_actor_forward_impl)


def actor_ref(x, h0, params):
    """Pure-JAX reference mirroring PyTorch semantics."""
    H = params["w1"].shape[0]
    a = jnp.tanh(x @ params["w1"].T + params["b1"])      # (B, T, H)

    def step(h, a_t):
        gi = a_t @ params["w_ih"].T + params["b_ih"]
        gh = h @ params["w_hh"].T + params["b_hh"]
        i_r, i_z, i_n = gi[:, :H], gi[:, H:2 * H], gi[:, 2 * H:]
        h_r, h_z, h_n = gh[:, :H], gh[:, H:2 * H], gh[:, 2 * H:]
        r = jax.nn.sigmoid(i_r + h_r)
        z = jax.nn.sigmoid(i_z + h_z)
        n = jnp.tanh(i_n + r * h_n)
        h_new = (1.0 - z) * n + z * h
        return h_new, h_new

    h_last, hs = jax.lax.scan(step, h0[0], jnp.transpose(a, (1, 0, 2)))
    hs = jnp.transpose(hs, (1, 0, 2))                    # (B, T, H)
    logits = hs @ params["w3"].T + params["b3"]
    return logits, h_last[None]


def init_params(key, state_dim, action_dim, hidden_size, num_agents):
    d_in = state_dim + num_agents + action_dim
    ks = jax.random.split(key, 6)
    ortho = jax.nn.initializers.orthogonal()
    k = 1.0 / jnp.sqrt(hidden_size)
    return {
        # fc1: orthogonal weight, zero bias (as in initialize_weights)
        "w1": ortho(ks[0], (hidden_size, d_in), jnp.float32),
        "b1": jnp.zeros((hidden_size,), jnp.float32),
        # GRU: PyTorch default uniform(-1/sqrt(H), 1/sqrt(H))
        "w_ih": jax.random.uniform(ks[1], (3 * hidden_size, hidden_size), jnp.float32, -k, k),
        "w_hh": jax.random.uniform(ks[2], (3 * hidden_size, hidden_size), jnp.float32, -k, k),
        "b_ih": jax.random.uniform(ks[3], (3 * hidden_size,), jnp.float32, -k, k),
        "b_hh": jax.random.uniform(ks[4], (3 * hidden_size,), jnp.float32, -k, k),
        # fc3: orthogonal weight, zero bias
        "w3": ortho(ks[5], (action_dim, hidden_size), jnp.float32),
        "b3": jnp.zeros((action_dim,), jnp.float32),
    }
    # TODO(synk): action_sampler (Categorical sampling) is host-side glue, not part of forward.


if __name__ == "__main__":
    state_dim, action_dim, hidden_size, num_agents = 10, 4, 32, 2
    B, T = 2, 8
    d_in = state_dim + num_agents + action_dim

    key = jax.random.PRNGKey(0)
    kp, kx, kh = jax.random.split(key, 3)
    params = init_params(kp, state_dim, action_dim, hidden_size, num_agents)

    x = jax.random.normal(kx, (B, T, d_in), jnp.float32)
    h0 = jax.random.normal(kh, (1, B, hidden_size), jnp.float32)

    logits, h_out = actor_forward(x, h0, params)
    jax.block_until_ready((logits, h_out))

    logits_ref, h_ref = actor_ref(x, h0, params)
    assert logits.shape == (B, T, action_dim)
    assert h_out.shape == (1, B, hidden_size)
    assert jnp.allclose(logits, logits_ref, atol=1e-5, rtol=1e-5)
    assert jnp.allclose(h_out, h_ref, atol=1e-5, rtol=1e-5)

    print("KERNEL_OK")
</pallas_src>

<mosaic_0001>
module attributes {stable_mosaic.version = 11 : i64} {
  func.func @actor_kernel(%arg0: memref<64x16xf32, #tpu.memory_space<vmem>>, %arg1: memref<8x32xf32, #tpu.memory_space<vmem>>, %arg2: memref<16x32xf32, #tpu.memory_space<vmem>>, %arg3: memref<1x32xf32, #tpu.memory_space<vmem>>, %arg4: memref<32x96xf32, #tpu.memory_space<vmem>>, %arg5: memref<1x96xf32, #tpu.memory_space<vmem>>, %arg6: memref<32x96xf32, #tpu.memory_space<vmem>>, %arg7: memref<1x96xf32, #tpu.memory_space<vmem>>, %arg8: memref<32x4xf32, #tpu.memory_space<vmem>>, %arg9: memref<1x4xf32, #tpu.memory_space<vmem>>, %arg10: memref<64x4xf32, #tpu.memory_space<vmem>>, %arg11: memref<8x32xf32, #tpu.memory_space<vmem>>) attributes {dimension_semantics = [], scalar_prefetch = 0 : i64, scratch_operands = 0 : i64, tpu.core_type = #tpu.core_type<tc>} {
    %c0 = arith.constant 0 : index
    %c0_0 = arith.constant 0 : index
    %0 = vector.load %arg0[%c0, %c0_0] : memref<64x16xf32, #tpu.memory_space<vmem>>, vector<64x16xf32>
    %c0_1 = arith.constant 0 : index
    %c0_2 = arith.constant 0 : index
    %1 = vector.load %arg2[%c0_1, %c0_2] : memref<16x32xf32, #tpu.memory_space<vmem>>, vector<16x32xf32>
    %cst = arith.constant dense<0.000000e+00> : vector<64x32xf32>
    %2 = tpu.matmul %0, %1, %cst {dimension_numbers = #tpu.dot_dimension_numbers<[1], [0], [0], [1], [0, 0, 1, 1], [], []>} : vector<64x16xf32>, vector<16x32xf32>, vector<64x32xf32> -> vector<64x32xf32>
    %c0_3 = arith.constant 0 : index
    %c0_4 = arith.constant 0 : index
    %3 = vector.load %arg3[%c0_3, %c0_4] : memref<1x32xf32, #tpu.memory_space<vmem>>, vector<1x32xf32>
    %4 = vector.broadcast %3 : vector<1x32xf32> to vector<64x32xf32>
    %5 = arith.addf %2, %4 : vector<64x32xf32>
    %6 = math.tanh %5 : vector<64x32xf32>
    %c0_5 = arith.constant 0 : index
    %c0_6 = arith.constant 0 : index
    %7 = vector.load %arg4[%c0_5, %c0_6] : memref<32x96xf32, #tpu.memory_space<vmem>>, vector<32x96xf32>
    %cst_7 = arith.constant dense<0.000000e+00> : vector<64x96xf32>
    %8 = tpu.matmul %6, %7, %cst_7 {dimension_numbers = #tpu.dot_dimension_numbers<[1], [0], [0], [1], [0, 0, 1, 1], [], []>} : vector<64x32xf32>, vector<32x96xf32>, vector<64x96xf32> -> vector<64x96xf32>
    %c0_8 = arith.constant 0 : index
    %c0_9 = arith.constant 0 : index
    %9 = vector.load %arg5[%c0_8, %c0_9] : memref<1x96xf32, #tpu.memory_space<vmem>>, vector<1x96xf32>
    %10 = vector.broadcast %9 : vector<1x96xf32> to vector<64x96xf32>
    %11 = arith.addf %8, %10 : vector<64x96xf32>
    %c0_10 = arith.constant 0 : index
    %c0_11 = arith.constant 0 : index
    %12 = vector.load %arg6[%c0_10, %c0_11] : memref<32x96xf32, #tpu.memory_space<vmem>>, vector<32x96xf32>
    %c0_12 = arith.constant 0 : index
    %c0_13 = arith.constant 0 : index
    %13 = vector.load %arg7[%c0_12, %c0_13] : memref<1x96xf32, #tpu.memory_space<vmem>>, vector<1x96xf32>
    %c0_14 = arith.constant 0 : index
    %c0_15 = arith.constant 0 : index
    %14 = vector.load %arg1[%c0_14, %c0_15] : memref<8x32xf32, #tpu.memory_space<vmem>>, vector<8x32xf32>
    %15 = vector.extract_strided_slice %11 {offsets = [0, 0], sizes = [8, 96], strides = [1, 1]} : vector<64x96xf32> to vector<8x96xf32>
    %cst_16 = arith.constant dense<0.000000e+00> : vector<8x96xf32>
    %16 = tpu.matmul %14, %12, %cst_16 {dimension_numbers = #tpu.dot_dimension_numbers<[1], [0], [0], [1], [0, 0, 1, 1], [], []>} : vector<8x32xf32>, vector<32x96xf32>, vector<8x96xf32> -> vector<8x96xf32>
    %17 = vector.broadcast %13 : vector<1x96xf32> to vector<8x96xf32>
    %18 = arith.addf %16, %17 : vector<8x96xf32>
    %19 = vector.extract_strided_slice %15 {offsets = [0, 0], sizes = [8, 32], strides = [1, 1]} : vector<8x96xf32> to vector<8x32xf32>
    %20 = vector.extract_strided_slice %18 {offsets = [0, 0], sizes = [8, 32], strides = [1, 1]} : vector<8x96xf32> to vector<8x32xf32>
    %21 = arith.addf %19, %20 : vector<8x32xf32>
    %22 = arith.negf %21 : vector<8x32xf32>
    %23 = math.exp %22 : vector<8x32xf32>
    %cst_17 = arith.constant 1.000000e+00 : f32
    %24 = vector.broadcast %cst_17 : f32 to vector<8x32xf32>
    %25 = arith.addf %24, %23 : vector<8x32xf32>
    %26 = arith.divf %24, %25 : vector<8x32xf32>
    %27 = vector.extract_strided_slice %15 {offsets = [0, 32], sizes = [8, 32], strides = [1, 1]} : vector<8x96xf32> to vector<8x32xf32>
    %28 = vector.extract_strided_slice %18 {offsets = [0, 32], sizes = [8, 32], strides = [1, 1]} : vector<8x96xf32> to vector<8x32xf32>
    %29 = arith.addf %27, %28 : vector<8x32xf32>
    %30 = arith.negf %29 : vector<8x32xf32>
    %31 = math.exp %30 : vector<8x32xf32>
    %cst_18 = arith.constant 1.000000e+00 : f32
    %32 = vector.broadcast %cst_18 : f32 to vector<8x32xf32>
    %33 = arith.addf %32, %31 : vector<8x32xf32>
    %34 = arith.divf %32, %33 : vector<8x32xf32>
    %35 = vector.extract_strided_slice %15 {offsets = [0, 64], sizes = [8, 32], strides = [1, 1]} : vector<8x96xf32> to vector<8x32xf32>
    %36 = vector.extract_strided_slice %18 {offsets = [0, 64], sizes = [8, 32], strides = [1, 1]} : vector<8x96xf32> to vector<8x32xf32>
    %37 = arith.mulf %26, %36 : vector<8x32xf32>
    %38 = arith.addf %35, %37 : vector<8x32xf32>
    %39 = math.tanh %38 : vector<8x32xf32>
    %cst_19 = arith.constant 1.000000e+00 : f32
    %40 = vector.broadcast %cst_19 : f32 to vector<8x32xf32>
    %41 = arith.subf %40, %34 : vector<8x32xf32>
    %42 = arith.mulf %41, %39 : vector<8x32xf32>
    %43 = arith.mulf %34, %14 : vector<8x32xf32>
    %44 = arith.addf %42, %43 : vector<8x32xf32>
    %45 = vector.extract_strided_slice %11 {offsets = [8, 0], sizes = [8, 96], strides = [1, 1]} : vector<64x96xf32> to vector<8x96xf32>
    %cst_20 = arith.constant dense<0.000000e+00> : vector<8x96xf32>
    %46 = tpu.matmul %44, %12, %cst_20 {dimension_numbers = #tpu.dot_dimension_numbers<[1], [0], [0], [1], [0, 0, 1, 1], [], []>} : vector<8x32xf32>, vector<32x96xf32>, vector<8x96xf32> -> vector<8x96xf32>
    %47 = vector.broadcast %13 : vector<1x96xf32> to vector<8x96xf32>
    %48 = arith.addf %46, %47 : vector<8x96xf32>
    %49 = vector.extract_strided_slice %45 {offsets = [0, 0], sizes = [8, 32], strides = [1, 1]} : vector<8x96xf32> to vector<8x32xf32>
    %50 = vector.extract_strided_slice %48 {offsets = [0, 0], sizes = [8, 32], strides = [1, 1]} : vector<8x96xf32> to vector<8x32xf32>
    %51 = arith.addf %49, %50 : vector<8x32xf32>
    %52 = arith.negf %51 : vector<8x32xf32>
    %53 = math.exp %52 : vector<8x32xf32>
    %cst_21 = arith.constant 1.000000e+00 : f32
    %54 = vector.broadcast %cst_21 : f32 to vector<8x32xf32>
    %55 = arith.addf %54, %53 : vector<8x32xf32>
    %56 = arith.divf %54, %55 : vector<8x32xf32>
    %57 = vector.extract_strided_slice %45 {offsets = [0, 32], sizes = [8, 32], strides = [1, 1]} : vector<8x96xf32> to vector<8x32xf32>
    %58 = vector.extract_strided_slice %48 {offsets = [0, 32], sizes = [8, 32], strides = [1, 1]} : vector<8x96xf32> to vector<8x32xf32>
    %59 = arith.addf %57, %58 : vector<8x32xf32>
    %60 = arith.negf %59 : vector<8x32xf32>
    %61 = math.exp %60 : vector<8x32xf32>
    %cst_22 = arith.constant 1.000000e+00 : f32
    %62 = vector.broadcast %cst_22 : f32 to vector<8x32xf32>
    %63 = arith.addf %62, %61 : vector<8x32xf32>
    %64 = arith.divf %62, %63 : vector<8x32xf32>
    %65 = vector.extract_strided_slice %45 {offsets = [0, 64], sizes = [8, 32], strides = [1, 1]} : vector<8x96xf32> to vector<8x32xf32>
    %66 = vector.extract_strided_slice %48 {offsets = [0, 64], sizes = [8, 32], strides = [1, 1]} : vector<8x96xf32> to vector<8x32xf32>
    %67 = arith.mulf %56, %66 : vector<8x32xf32>
    %68 = arith.addf %65, %67 : vector<8x32xf32>
    %69 = math.tanh %68 : vector<8x32xf32>
    %cst_23 = arith.constant 1.000000e+00 : f32
    %70 = vector.broadcast %cst_23 : f32 to vector<8x32xf32>
    %71 = arith.subf %70, %64 : vector<8x32xf32>
    %72 = arith.mulf %71, %69 : vector<8x32xf32>
    %73 = arith.mulf %64, %44 : vector<8x32xf32>
    %74 = arith.addf %72, %73 : vector<8x32xf32>
    %75 = vector.extract_strided_slice %11 {offsets = [16, 0], sizes = [8, 96], strides = [1, 1]} : vector<64x96xf32> to vector<8x96xf32>
    %cst_24 = arith.constant dense<0.000000e+00> : vector<8x96xf32>
    %76 = tpu.matmul %74, %12, %cst_24 {dimension_numbers = #tpu.dot_dimension_numbers<[1], [0], [0], [1], [0, 0, 1, 1], [], []>} : vector<8x32xf32>, vector<32x96xf32>, vector<8x96xf32> -> vector<8x96xf32>
    %77 = vector.broadcast %13 : vector<1x96xf32> to vector<8x96xf32>
    %78 = arith.addf %76, %77 : vector<8x96xf32>
    %79 = vector.extract_strided_slice %75 {offsets = [0, 0], sizes = [8, 32], strides = [1, 1]} : vector<8x96xf32> to vector<8x32xf32>
    %80 = vector.extract_strided_slice %78 {offsets = [0, 0], sizes = [8, 32], strides = [1, 1]} : vector<8x96xf32> to vector<8x32xf32>
    %81 = arith.addf %79, %80 : vector<8x32xf32>
    %82 = arith.negf %81 : vector<8x32xf32>
    %83 = math.exp %82 : vector<8x32xf32>
    %cst_25 = arith.constant 1.000000e+00 : f32
    %84 = vector.broadcast %cst_25 : f32 to vector<8x32xf32>
    %85 = arith.addf %84, %83 : vector<8x32xf32>
    %86 = arith.divf %84, %85 : vector<8x32xf32>
    %87 = vector.extract_strided_slice %75 {offsets = [0, 32], sizes = [8, 32], strides = [1, 1]} : vector<8x96xf32> to vector<8x32xf32>
    %88 = vector.extract_strided_slice %78 {offsets = [0, 32], sizes = [8, 32], strides = [1, 1]} : vector<8x96xf32> to vector<8x32xf32>
    %89 = arith.addf %87, %88 : vector<8x32xf32>
    %90 = arith.negf %89 : vector<8x32xf32>
    %91 = math.exp %90 : vector<8x32xf32>
    %cst_26 = arith.constant 1.000000e+00 : f32
    %92 = vector.broadcast %cst_26 : f32 to vector<8x32xf32>
    %93 = arith.addf %92, %91 : vector<8x32xf32>
    %94 = arith.divf %92, %93 : vector<8x32xf32>
    %95 = vector.extract_strided_slice %75 {offsets = [0, 64], sizes = [8, 32], strides = [1, 1]} : vector<8x96xf32> to vector<8x32xf32>
    %96 = vector.extract_strided_slice %78 {offsets = [0, 64], sizes = [8, 32], strides = [1, 1]} : vector<8x96xf32> to vector<8x32xf32>
    %97 = arith.mulf %86, %96 : vector<8x32xf32>
    %98 = arith.addf %95, %97 : vector<8x32xf32>
    %99 = math.tanh %98 : vector<8x32xf32>
    %cst_27 = arith.constant 1.000000e+00 : f32
    %100 = vector.broadcast %cst_27 : f32 to vector<8x32xf32>
    %101 = arith.subf %100, %94 : vector<8x32xf32>
    %102 = arith.mulf %101, %99 : vector<8x32xf32>
    %103 = arith.mulf %94, %74 : vector<8x32xf32>
    %104 = arith.addf %102, %103 : vector<8x32xf32>
    %105 = vector.extract_strided_slice %11 {offsets = [24, 0], sizes = [8, 96], strides = [1, 1]} : vector<64x96xf32> to vector<8x96xf32>
    %cst_28 = arith.constant dense<0.000000e+00> : vector<8x96xf32>
    %106 = tpu.matmul %104, %12, %cst_28 {dimension_numbers = #tpu.dot_dimension_numbers<[1], [0], [0], [1], [0, 0, 1, 1], [], []>} : vector<8x32xf32>, vector<32x96xf32>, vector<8x96xf32> -> vector<8x96xf32>
    %107 = vector.broadcast %13 : vector<1x96xf32> to vector<8x96xf32>
    %108 = arith.addf %106, %107 : vector<8x96xf32>
    %109 = vector.extract_strided_slice %105 {offsets = [0, 0], sizes = [8, 32], strides = [1, 1]} : vector<8x96xf32> to vector<8x32xf32>
    %110 = vector.extract_strided_slice %108 {offsets = [0, 0], sizes = [8, 32], strides = [1, 1]} : vector<8x96xf32> to vector<8x32xf32>
    %111 = arith.addf %109, %110 : vector<8x32xf32>
    %112 = arith.negf %111 : vector<8x32xf32>
    %113 = math.exp %112 : vector<8x32xf32>
    %cst_29 = arith.constant 1.000000e+00 : f32
    %114 = vector.broadcast %cst_29 : f32 to vector<8x32xf32>
    %115 = arith.addf %114, %113 : vector<8x32xf32>
    %116 = arith.divf %114, %115 : vector<8x32xf32>
    %117 = vector.extract_strided_slice %105 {offsets = [0, 32], sizes = [8, 32], strides = [1, 1]} : vector<8x96xf32> to vector<8x32xf32>
    %118 = vector.extract_strided_slice %108 {offsets = [0, 32], sizes = [8, 32], strides = [1, 1]} : vector<8x96xf32> to vector<8x32xf32>
    %119 = arith.addf %117, %118 : vector<8x32xf32>
    %120 = arith.negf %119 : vector<8x32xf32>
    %121 = math.exp %120 : vector<8x32xf32>
    %cst_30 = arith.constant 1.000000e+00 : f32
    %122 = vector.broadcast %cst_30 : f32 to vector<8x32xf32>
    %123 = arith.addf %122, %121 : vector<8x32xf32>
    %124 = arith.divf %122, %123 : vector<8x32xf32>
    %125 = vector.extract_strided_slice %105 {offsets = [0, 64], sizes = [8, 32], strides = [1, 1]} : vector<8x96xf32> to vector<8x32xf32>
    %126 = vector.extract_strided_slice %108 {offsets = [0, 64], sizes = [8, 32], strides = [1, 1]} : vector<8x96xf32> to vector<8x32xf32>
    %127 = arith.mulf %116, %126 : vector<8x32xf32>
    %128 = arith.addf %125, %127 : vector<8x32xf32>
    %129 = math.tanh %128 : vector<8x32xf32>
    %cst_31 = arith.constant 1.000000e+00 : f32
    %130 = vector.broadcast %cst_31 : f32 to vector<8x32xf32>
    %131 = arith.subf %130, %124 : vector<8x32xf32>
    %132 = arith.mulf %131, %129 : vector<8x32xf32>
    %133 = arith.mulf %124, %104 : vector<8x32xf32>
    %134 = arith.addf %132, %133 : vector<8x32xf32>
    %135 = vector.extract_strided_slice %11 {offsets = [32, 0], sizes = [8, 96], strides = [1, 1]} : vector<64x96xf32> to vector<8x96xf32>
    %cst_32 = arith.constant dense<0.000000e+00> : vector<8x96xf32>
    %136 = tpu.matmul %134, %12, %cst_32 {dimension_numbers = #tpu.dot_dimension_numbers<[1], [0], [0], [1], [0, 0, 1, 1], [], []>} : vector<8x32xf32>, vector<32x96xf32>, vector<8x96xf32> -> vector<8x96xf32>
    %137 = vector.broadcast %13 : vector<1x96xf32> to vector<8x96xf32>
    %138 = arith.addf %136, %137 : vector<8x96xf32>
    %139 = vector.extract_strided_slice %135 {offsets = [0, 0], sizes = [8, 32], strides = [1, 1]} : vector<8x96xf32> to vector<8x32xf32>
    %140 = vector.extract_strided_slice %138 {offsets = [0, 0], sizes = [8, 32], strides = [1, 1]} : vector<8x96xf32> to vector<8x32xf32>
    %141 = arith.addf %139, %140 : vector<8x32xf32>
    %142 = arith.negf %141 : vector<8x32xf32>
    %143 = math.exp %142 : vector<8x32xf32>
    %cst_33 = arith.constant 1.000000e+00 : f32
    %144 = vector.broadcast %cst_33 : f32 to vector<8x32xf32>
    %145 = arith.addf %144, %143 : vector<8x32xf32>
    %146 = arith.divf %144, %145 : vector<8x32xf32>
    %147 = vector.extract_strided_slice %135 {offsets = [0, 32], sizes = [8, 32], strides = [1, 1]} : vector<8x96xf32> to vector<8x32xf32>
    %148 = vector.extract_strided_slice %138 {offsets = [0, 32], sizes = [8, 32], strides = [1, 1]} : vector<8x96xf32> to vector<8x32xf32>
    %149 = arith.addf %147, %148 : vector<8x32xf32>
    %150 = arith.negf %149 : vector<8x32xf32>
    %151 = math.exp %150 : vector<8x32xf32>
    %cst_34 = arith.constant 1.000000e+00 : f32
    %152 = vector.broadcast %cst_34 : f32 to vector<8x32xf32>
    %153 = arith.addf %152, %151 : vector<8x32xf32>
    %154 = arith.divf %152, %153 : vector<8x32xf32>
    %155 = vector.extract_strided_slice %135 {offsets = [0, 64], sizes = [8, 32], strides = [1, 1]} : vector<8x96xf32> to vector<8x32xf32>
    %156 = vector.extract_strided_slice %138 {offsets = [0, 64], sizes = [8, 32], strides = [1, 1]} : vector<8x96xf32> to vector<8x32xf32>
    %157 = arith.mulf %146, %156 : vector<8x32xf32>
    %158 = arith.addf %155, %157 : vector<8x32xf32>
    %159 = math.tanh %158 : vector<8x32xf32>
    %cst_35 = arith.constant 1.000000e+00 : f32
    %160 = vector.broadcast %cst_35 : f32 to vector<8x32xf32>
    %161 = arith.subf %160, %154 : vector<8x32xf32>
    %162 = arith.mulf %161, %159 : vector<8x32xf32>
    %163 = arith.mulf %154, %134 : vector<8x32xf32>
    %164 = arith.addf %162, %163 : vector<8x32xf32>
    %165 = vector.extract_strided_slice %11 {offsets = [40, 0], sizes = [8, 96], strides = [1, 1]} : vector<64x96xf32> to vector<8x96xf32>
    %cst_36 = arith.constant dense<0.000000e+00> : vector<8x96xf32>
    %166 = tpu.matmul %164, %12, %cst_36 {dimension_numbers = #tpu.dot_dimension_numbers<[1], [0], [0], [1], [0, 0, 1, 1], [], []>} : vector<8x32xf32>, vector<32x96xf32>, vector<8x96xf32> -> vector<8x96xf32>
    %167 = vector.broadcast %13 : vector<1x96xf32> to vector<8x96xf32>
    %168 = arith.addf %166, %167 : vector<8x96xf32>
    %169 = vector.extract_strided_slice %165 {offsets = [0, 0], sizes = [8, 32], strides = [1, 1]} : vector<8x96xf32> to vector<8x32xf32>
    %170 = vector.extract_strided_slice %168 {offsets = [0, 0], sizes = [8, 32], strides = [1, 1]} : vector<8x96xf32> to vector<8x32xf32>
    %171 = arith.addf %169, %170 : vector<8x32xf32>
    %172 = arith.negf %171 : vector<8x32xf32>
    %173 = math.exp %172 : vector<8x32xf32>
    %cst_37 = arith.constant 1.000000e+00 : f32
    %174 = vector.broadcast %cst_37 : f32 to vector<8x32xf32>
    %175 = arith.addf %174, %173 : vector<8x32xf32>
    %176 = arith.divf %174, %175 : vector<8x32xf32>
    %177 = vector.extract_strided_slice %165 {offsets = [0, 32], sizes = [8, 32], strides = [1, 1]} : vector<8x96xf32> to vector<8x32xf32>
    %178 = vector.extract_strided_slice %168 {offsets = [0, 32], sizes = [8, 32], strides = [1, 1]} : vector<8x96xf32> to vector<8x32xf32>
    %179 = arith.addf %177, %178 : vector<8x32xf32>
    %180 = arith.negf %179 : vector<8x32xf32>
    %181 = math.exp %180 : vector<8x32xf32>
    %cst_38 = arith.constant 1.000000e+00 : f32
    %182 = vector.broadcast %cst_38 : f32 to vector<8x32xf32>
    %183 = arith.addf %182, %181 : vector<8x32xf32>
    %184 = arith.divf %182, %183 : vector<8x32xf32>
    %185 = vector.extract_strided_slice %165 {offsets = [0, 64], sizes = [8, 32], strides = [1, 1]} : vector<8x96xf32> to vector<8x32xf32>
    %186 = vector.extract_strided_slice %168 {offsets = [0, 64], sizes = [8, 32], strides = [1, 1]} : vector<8x96xf32> to vector<8x32xf32>
    %187 = arith.mulf %176, %186 : vector<8x32xf32>
    %188 = arith.addf %185, %187 : vector<8x32xf32>
    %189 = math.tanh %188 : vector<8x32xf32>
    %cst_39 = arith.constant 1.000000e+00 : f32
    %190 = vector.broadcast %cst_39 : f32 to vector<8x32xf32>
    %191 = arith.subf %190, %184 : vector<8x32xf32>
    %192 = arith.mulf %191, %189 : vector<8x32xf32>
    %193 = arith.mulf %184, %164 : vector<8x32xf32>
    %194 = arith.addf %192, %193 : vector<8x32xf32>
    %195 = vector.extract_strided_slice %11 {offsets = [48, 0], sizes = [8, 96], strides = [1, 1]} : vector<64x96xf32> to vector<8x96xf32>
    %cst_40 = arith.constant dense<0.000000e+00> : vector<8x96xf32>
    %196 = tpu.matmul %194, %12, %cst_40 {dimension_numbers = #tpu.dot_dimension_numbers<[1], [0], [0], [1], [0, 0, 1, 1], [], []>} : vector<8x32xf32>, vector<32x96xf32>, vector<8x96xf32> -> vector<8x96xf32>
    %197 = vector.broadcast %13 : vector<1x96xf32> to vector<8x96xf32>
    %198 = arith.addf %196, %197 : vector<8x96xf32>
    %199 = vector.extract_strided_slice %195 {offsets = [0, 0], sizes = [8, 32], strides = [1, 1]} : vector<8x96xf32> to vector<8x32xf32>
    %200 = vector.extract_strided_slice %198 {offsets = [0, 0], sizes = [8, 32], strides = [1, 1]} : vector<8x96xf32> to vector<8x32xf32>
    %201 = arith.addf %199, %200 : vector<8x32xf32>
    %202 = arith.negf %201 : vector<8x32xf32>
    %203 = math.exp %202 : vector<8x32xf32>
    %cst_41 = arith.constant 1.000000e+00 : f32
    %204 = vector.broadcast %cst_41 : f32 to vector<8x32xf32>
    %205 = arith.addf %204, %203 : vector<8x32xf32>
    %206 = arith.divf %204, %205 : vector<8x32xf32>
    %207 = vector.extract_strided_slice %195 {offsets = [0, 32], sizes = [8, 32], strides = [1, 1]} : vector<8x96xf32> to vector<8x32xf32>
    %208 = vector.extract_strided_slice %198 {offsets = [0, 32], sizes = [8, 32], strides = [1, 1]} : vector<8x96xf32> to vector<8x32xf32>
    %209 = arith.addf %207, %208 : vector<8x32xf32>
    %210 = arith.negf %209 : vector<8x32xf32>
    %211 = math.exp %210 : vector<8x32xf32>
    %cst_42 = arith.constant 1.000000e+00 : f32
    %212 = vector.broadcast %cst_42 : f32 to vector<8x32xf32>
    %213 = arith.addf %212, %211 : vector<8x32xf32>
    %214 = arith.divf %212, %213 : vector<8x32xf32>
    %215 = vector.extract_strided_slice %195 {offsets = [0, 64], sizes = [8, 32], strides = [1, 1]} : vector<8x96xf32> to vector<8x32xf32>
    %216 = vector.extract_strided_slice %198 {offsets = [0, 64], sizes = [8, 32], strides = [1, 1]} : vector<8x96xf32> to vector<8x32xf32>
    %217 = arith.mulf %206, %216 : vector<8x32xf32>
    %218 = arith.addf %215, %217 : vector<8x32xf32>
    %219 = math.tanh %218 : vector<8x32xf32>
    %cst_43 = arith.constant 1.000000e+00 : f32
    %220 = vector.broadcast %cst_43 : f32 to vector<8x32xf32>
    %221 = arith.subf %220, %214 : vector<8x32xf32>
    %222 = arith.mulf %221, %219 : vector<8x32xf32>
    %223 = arith.mulf %214, %194 : vector<8x32xf32>
    %224 = arith.addf %222, %223 : vector<8x32xf32>
    %225 = vector.extract_strided_slice %11 {offsets = [56, 0], sizes = [8, 96], strides = [1, 1]} : vector<64x96xf32> to vector<8x96xf32>
    %cst_44 = arith.constant dense<0.000000e+00> : vector<8x96xf32>
    %226 = tpu.matmul %224, %12, %cst_44 {dimension_numbers = #tpu.dot_dimension_numbers<[1], [0], [0], [1], [0, 0, 1, 1], [], []>} : vector<8x32xf32>, vector<32x96xf32>, vector<8x96xf32> -> vector<8x96xf32>
    %227 = vector.broadcast %13 : vector<1x96xf32> to vector<8x96xf32>
    %228 = arith.addf %226, %227 : vector<8x96xf32>
    %229 = vector.extract_strided_slice %225 {offsets = [0, 0], sizes = [8, 32], strides = [1, 1]} : vector<8x96xf32> to vector<8x32xf32>
    %230 = vector.extract_strided_slice %228 {offsets = [0, 0], sizes = [8, 32], strides = [1, 1]} : vector<8x96xf32> to vector<8x32xf32>
    %231 = arith.addf %229, %230 : vector<8x32xf32>
    %232 = arith.negf %231 : vector<8x32xf32>
    %233 = math.exp %232 : vector<8x32xf32>
    %cst_45 = arith.constant 1.000000e+00 : f32
    %234 = vector.broadcast %cst_45 : f32 to vector<8x32xf32>
    %235 = arith.addf %234, %233 : vector<8x32xf32>
    %236 = arith.divf %234, %235 : vector<8x32xf32>
    %237 = vector.extract_strided_slice %225 {offsets = [0, 32], sizes = [8, 32], strides = [1, 1]} : vector<8x96xf32> to vector<8x32xf32>
    %238 = vector.extract_strided_slice %228 {offsets = [0, 32], sizes = [8, 32], strides = [1, 1]} : vector<8x96xf32> to vector<8x32xf32>
    %239 = arith.addf %237, %238 : vector<8x32xf32>
    %240 = arith.negf %239 : vector<8x32xf32>
    %241 = math.exp %240 : vector<8x32xf32>
    %cst_46 = arith.constant 1.000000e+00 : f32
    %242 = vector.broadcast %cst_46 : f32 to vector<8x32xf32>
    %243 = arith.addf %242, %241 : vector<8x32xf32>
    %244 = arith.divf %242, %243 : vector<8x32xf32>
    %245 = vector.extract_strided_slice %225 {offsets = [0, 64], sizes = [8, 32], strides = [1, 1]} : vector<8x96xf32> to vector<8x32xf32>
    %246 = vector.extract_strided_slice %228 {offsets = [0, 64], sizes = [8, 32], strides = [1, 1]} : vector<8x96xf32> to vector<8x32xf32>
    %247 = arith.mulf %236, %246 : vector<8x32xf32>
    %248 = arith.addf %245, %247 : vector<8x32xf32>
    %249 = math.tanh %248 : vector<8x32xf32>
    %cst_47 = arith.constant 1.000000e+00 : f32
    %250 = vector.broadcast %cst_47 : f32 to vector<8x32xf32>
    %251 = arith.subf %250, %244 : vector<8x32xf32>
    %252 = arith.mulf %251, %249 : vector<8x32xf32>
    %253 = arith.mulf %244, %224 : vector<8x32xf32>
    %254 = arith.addf %252, %253 : vector<8x32xf32>
    %255 = tpu.concatenate %44, %74, %104, %134, %164, %194, %224, %254 in 0 : vector<8x32xf32>, vector<8x32xf32>, vector<8x32xf32>, vector<8x32xf32>, vector<8x32xf32>, vector<8x32xf32>, vector<8x32xf32>, vector<8x32xf32> -> vector<64x32xf32>
    %c0_48 = arith.constant 0 : index
    %c0_49 = arith.constant 0 : index
    %256 = vector.load %arg8[%c0_48, %c0_49] : memref<32x4xf32, #tpu.memory_space<vmem>>, vector<32x4xf32>
    %cst_50 = arith.constant dense<0.000000e+00> : vector<64x4xf32>
    %257 = tpu.matmul %255, %256, %cst_50 {dimension_numbers = #tpu.dot_dimension_numbers<[1], [0], [0], [1], [0, 0, 1, 1], [], []>} : vector<64x32xf32>, vector<32x4xf32>, vector<64x4xf32> -> vector<64x4xf32>
    %c0_51 = arith.constant 0 : index
    %c0_52 = arith.constant 0 : index
    %258 = vector.load %arg9[%c0_51, %c0_52] : memref<1x4xf32, #tpu.memory_space<vmem>>, vector<1x4xf32>
    %259 = vector.broadcast %258 : vector<1x4xf32> to vector<64x4xf32>
    %260 = arith.addf %257, %259 : vector<64x4xf32>
    %c0_53 = arith.constant 0 : index
    %c0_54 = arith.constant 0 : index
    %261 = vector.load %arg10[%c0_53, %c0_54] : memref<64x4xf32, #tpu.memory_space<vmem>>, vector<64x4xf32>
    tpu.vector_store %arg10[%c0_53, %c0_54], %260 {strides = array<i32>} : memref<64x4xf32, #tpu.memory_space<vmem>>, vector<64x4xf32>,
    %c0_55 = arith.constant 0 : index
    %c0_56 = arith.constant 0 : index
    %262 = vector.load %arg11[%c0_55, %c0_56] : memref<8x32xf32, #tpu.memory_space<vmem>>, vector<8x32xf32>
    tpu.vector_store %arg11[%c0_55, %c0_56], %254 {strides = array<i32>} : memref<8x32xf32, #tpu.memory_space<vmem>>, vector<8x32xf32>,
    return
  }
}

</mosaic_0001>

<llo_original>
// kernel: _actor_forward_impl.1
$region0: #{_actor_forward_impl.1}
  #allocation0 [shape = 'u32[]', space=smem, size = 0x4, offset = 0x4, fixed_abs, tag = 'smem constant byte address 0x4 - core index']
  #allocation1 [shape = 'u32[144,128]{1,0:T(1,128)}', space=vmem, size = 0x12000, scoped, tag = 'internal scratch']
  %s0 = inlined_call_operand.vmem [shape: f32[64,16], index: 0, kind: input, shape index: {}]
  %s1 = inlined_call_operand.vmem [shape: f32[8,32], index: 1, kind: input, shape index: {}]
  %s2 = inlined_call_operand.vmem [shape: f32[16,32], index: 2, kind: input, shape index: {}]
  %s3 = inlined_call_operand.vmem [shape: f32[1,32], index: 3, kind: input, shape index: {}]
  %s4 = inlined_call_operand.vmem [shape: f32[32,96], index: 4, kind: input, shape index: {}]
  %s5 = inlined_call_operand.vmem [shape: f32[1,96], index: 5, kind: input, shape index: {}]
  %s6 = inlined_call_operand.vmem [shape: f32[32,96], index: 6, kind: input, shape index: {}]
  %s7 = inlined_call_operand.vmem [shape: f32[1,96], index: 7, kind: input, shape index: {}]
  %s8 = inlined_call_operand.vmem [shape: f32[32,4], index: 8, kind: input, shape index: {}]
  %s9 = inlined_call_operand.vmem [shape: f32[1,4], index: 9, kind: input, shape index: {}]
  %s10 = inlined_call_operand.vmem [shape: f32[64,4], index: 10, kind: output, shape index: {0}]
  %s11 = inlined_call_operand.vmem [shape: f32[8,32], index: 11, kind: output, shape index: {1}]
  %12 = xla_tuple %s10, %s11
  %s13 = sld [smem:[#allocation0]]
  $region58: #{_actor_forward_impl.1} parent=0
    _
  %s15 = ssub.s32 1, %s13
  %s16 = scalar_select 0, %s15, %s13
  // Predicated region
  $region2: #{_actor_forward_impl.1} parent=0 // pred_check
    _
  $region3: #{_actor_forward_impl.1} parent=0 // pred_check_branch
    %18 = sbr.rel (0) target = $region5
  $region4: #{_actor_forward_impl.1} parent=0 // pred_region
    _
  $region5: #{_actor_forward_impl.1} parent=0 // pred_fallthru
    _
  // Predicated region
  $region6: #{_actor_forward_impl.1} parent=0 // pred_check
    _
  $region7: #{_actor_forward_impl.1} parent=0 // pred_check_branch
    %20 = sbr.rel (0) target = $region9
  $region8: #{_actor_forward_impl.1} parent=0 // pred_region
    _
  $region9: #{_actor_forward_impl.1} parent=0 // pred_fallthru
    _
  // Predicated region
  $region10: #{_actor_forward_impl.1} parent=0 // pred_check
    _
  $region11: #{_actor_forward_impl.1} parent=0 // pred_check_branch
    %22 = sbr.rel (0) target = $region13
  $region12: #{_actor_forward_impl.1} parent=0 // pred_region
    _
  $region13: #{_actor_forward_impl.1} parent=0 // pred_fallthru
    _
  // Predicated region
  $region14: #{_actor_forward_impl.1} parent=0 // pred_check
    _
  $region15: #{_actor_forward_impl.1} parent=0 // pred_check_branch
    %24 = sbr.rel (0) target = $region17
  $region16: #{_actor_forward_impl.1} parent=0 // pred_region
    _
  $region17: #{_actor_forward_impl.1} parent=0 // pred_fallthru
    _
  // Predicated region
  $region18: #{_actor_forward_impl.1} parent=0 // pred_check
    _
  $region19: #{_actor_forward_impl.1} parent=0 // pred_check_branch
    %26 = sbr.rel (0) target = $region21
  $region20: #{_actor_forward_impl.1} parent=0 // pred_region
    _
  $region21: #{_actor_forward_impl.1} parent=0 // pred_fallthru
    _
  // Predicated region
  $region22: #{_actor_forward_impl.1} parent=0 // pred_check
    _
  $region23: #{_actor_forward_impl.1} parent=0 // pred_check_branch
    %28 = sbr.rel (0) target = $region25
  $region24: #{_actor_forward_impl.1} parent=0 // pred_region
    _
  $region25: #{_actor_forward_impl.1} parent=0 // pred_fallthru
    _
  // Predicated region
  $region26: #{_actor_forward_impl.1} parent=0 // pred_check
    _
  $region27: #{_actor_forward_impl.1} parent=0 // pred_check_branch
    %30 = sbr.rel (0) target = $region29
  $region28: #{_actor_forward_impl.1} parent=0 // pred_region
    _
  $region29: #{_actor_forward_impl.1} parent=0 // pred_fallthru
    _
  // Predicated region
  $region30: #{_actor_forward_impl.1} parent=0 // pred_check
    _
  $region31: #{_actor_forward_impl.1} parent=0 // pred_check_branch
    %32 = sbr.rel (0) target = $region33
  $region32: #{_actor_forward_impl.1} parent=0 // pred_region
    _
  $region33: #{_actor_forward_impl.1} parent=0 // pred_fallthru
    _
  // Predicated region
  $region34: #{_actor_forward_impl.1} parent=0 // pred_check
    _
  $region35: #{_actor_forward_impl.1} parent=0 // pred_check_branch
    %34 = sbr.rel (0) target = $region37
  $region36: #{_actor_forward_impl.1} parent=0 // pred_region
    _
  $region37: #{_actor_forward_impl.1} parent=0 // pred_fallthru
    _
  // Predicated region
  $region38: #{_actor_forward_impl.1} parent=0 // pred_check
    _
  $region39: #{_actor_forward_impl.1} parent=0 // pred_check_branch
    %36 = sbr.rel (0) target = $region41
  $region40: #{_actor_forward_impl.1} parent=0 // pred_region
    _
  $region41: #{_actor_forward_impl.1} parent=0 // pred_fallthru
    _
  %v37 = vld [vmem:[%s0] sm:$0xff]
  %v38 = vld [vmem:[%s0 + $0x8] sm:$0xff]
  %v39 = vld [vmem:[%s0 + $0x10] sm:$0xff]
  %v40 = vld [vmem:[%s0 + $0x18] sm:$0xff]
  %v41 = vld [vmem:[%s0 + $0x20] sm:$0xff]
  %v42 = vld [vmem:[%s0 + $0x28] sm:$0xff]
  %v43 = vld [vmem:[%s0 + $0x30] sm:$0xff]
  %v44 = vld [vmem:[%s0 + $0x38] sm:$0xff]
  %v45 = vld [vmem:[%s2] sm:$0xff]
  %v46 = vld [vmem:[%s2 + $0x8] sm:$0xff]
  %v47 = vld [vmem:[%s3] sm:$0x1]
  %v49 = vlaneseq
  %v50 = vshrl.u32 %v49, 7
  %v51 = vsub.s32 0, %v50
  %v52 = vrot.slane %v47, %v51
  %vm54 = vcmask 130048
  %v56 = vsel %vm54, %v37, 0
  %v59 = vsel %vm54, %v38, 0
  %v62 = vsel %vm54, %v39, 0
  %v65 = vsel %vm54, %v40, 0
  %v68 = vsel %vm54, %v41, 0
  %v71 = vsel %vm54, %v42, 0
  %v74 = vsel %vm54, %v43, 0
  %v77 = vsel %vm54, %v44, 0
  %79 = vmatprep.subr.mxu0 0.0
  %80 = vmatpush1.msra.mxu0 %v45
  %81 = vmatprep.subr.mxu0 0.0
  %82 = vmatpush1.msra.mxu0 %v46
  %83 = vmatprep.subr.mxu0 0.0
  %84 = vmatpush1.msra.mxu0 0.0
  %85 = vmatprep.subr.mxu0 0.0
  %86 = vmatpush1.msra.mxu0 0.0
  %87 = vmatprep.subr.mxu0 0.0
  %88 = vmatpush1.msra.mxu0 0.0
  %89 = vmatprep.subr.mxu0 0.0
  %90 = vmatpush1.msra.mxu0 0.0
  %91 = vmatprep.subr.mxu0 0.0
  %92 = vmatpush1.msra.mxu0 0.0
  %93 = vmatprep.subr.mxu0 0.0
  %94 = vmatpush1.msra.mxu0 0.0
  %95 = vmatprep.subr.mxu0 0.0
  %96 = vmatpush1.msra.mxu0 0.0
  %97 = vmatprep.subr.mxu0 0.0
  %98 = vmatpush1.msra.mxu0 0.0
  %99 = vmatprep.subr.mxu0 0.0
  %100 = vmatpush1.msra.mxu0 0.0
  %101 = vmatprep.subr.mxu0 0.0
  %102 = vmatpush1.msra.mxu0 0.0
  %103 = vmatprep.subr.mxu0 0.0
  %104 = vmatpush1.msra.mxu0 0.0
  %105 = vmatprep.subr.mxu0 0.0
  %106 = vmatpush1.msra.mxu0 0.0
  %107 = vmatprep.subr.mxu0 0.0
  %108 = vmatpush1.msra.mxu0 0.0
  %109 = vmatprep.subr.mxu0 0.0
  %110 = vmatpush1.msra.mxu0 0.0
  %111 = vmatprep.subr.mxu0 0.0
  %112 = vmatpush1.msra.mxu0 0.0
  %113 = vmatprep.subr.mxu0 0.0
  %114 = vmatpush1.msra.mxu0 0.0
  %115 = vmatprep.subr.mxu0 0.0
  %116 = vmatpush1.msra.mxu0 0.0
  %117 = vmatprep.subr.mxu0 0.0
  %118 = vmatpush1.msra.mxu0 0.0
  %119 = vmatprep.subr.mxu0 0.0
  %120 = vmatpush1.msra.mxu0 0.0
  %121 = vmatprep.subr.mxu0 0.0
  %122 = vmatpush1.msra.mxu0 0.0
  %123 = vmatprep.subr.mxu0 0.0
  %124 = vmatpush1.msra.mxu0 0.0
  %125 = vmatprep.subr.mxu0 0.0
  %126 = vmatpush1.msra.mxu0 0.0
  %127 = vmatprep.subr.mxu0 0.0
  %128 = vmatpush1.msra.mxu0 0.0
  %129 = vmatprep.subr.mxu0 0.0
  %130 = vmatpush1.msra.mxu0 0.0
  %131 = vmatprep.subr.mxu0 0.0
  %132 = vmatpush1.msra.mxu0 0.0
  %133 = vmatprep.subr.mxu0 0.0
  %134 = vmatpush1.msra.mxu0 0.0
  %135 = vmatprep.subr.mxu0 0.0
  %136 = vmatpush1.msra.mxu0 0.0
  %137 = vmatprep.subr.mxu0 0.0
  %138 = vmatpush1.msra.mxu0 0.0
  %139 = vmatprep.subr.mxu0 0.0
  %140 = vmatpush1.msra.mxu0 0.0
  %141 = vmatprep.subr.mxu0 0.0
  %142 = vmatpush1.msra.mxu0 0.0
  %143 = vmatprep.mubr.f32.mxu0 0.0
  %144 = vmatmul.mubr.f32.gmra.mrb[0].mxu0 %v56
  %v145 = vpop.f32.mrb[0].mxu0
  %v146 = vadd.f32 %v52, %v145
  %v147 = vpop.f32.mrb[0].mxu0
  %148 = vmatprep.mubr.f32.mxu0 0.0
  %149 = vmatmul.mubr.f32.gmra.mrb[0].mxu0 %v59
  %v150 = vpop.f32.mrb[0].mxu0
  %v151 = vadd.f32 %v52, %v150
  %v152 = vpop.f32.mrb[0].mxu0
  %153 = vmatprep.mubr.f32.mxu0 0.0
  %154 = vmatmul.mubr.f32.gmra.mrb[0].mxu0 %v62
  %v155 = vpop.f32.mrb[0].mxu0
  %v156 = vadd.f32 %v52, %v155
  %v157 = vpop.f32.mrb[0].mxu0
  %158 = vmatprep.mubr.f32.mxu0 0.0
  %159 = vmatmul.mubr.f32.gmra.mrb[0].mxu0 %v65
  %v160 = vpop.f32.mrb[0].mxu0
  %v161 = vadd.f32 %v52, %v160
  %v162 = vpop.f32.mrb[0].mxu0
  %163 = vmatprep.mubr.f32.mxu0 0.0
  %164 = vmatmul.mubr.f32.gmra.mrb[0].mxu0 %v68
  %v165 = vpop.f32.mrb[0].mxu0
  %v166 = vadd.f32 %v52, %v165
  %v167 = vpop.f32.mrb[0].mxu0
  %168 = vmatprep.mubr.f32.mxu0 0.0
  %169 = vmatmul.mubr.f32.gmra.mrb[0].mxu0 %v71
  %v170 = vpop.f32.mrb[0].mxu0
  %v171 = vadd.f32 %v52, %v170
  %v172 = vpop.f32.mrb[0].mxu0
  %173 = vmatprep.mubr.f32.mxu0 0.0
  %174 = vmatmul.mubr.f32.gmra.mrb[0].mxu0 %v74
  %v175 = vpop.f32.mrb[0].mxu0
  %v176 = vadd.f32 %v52, %v175
  %v177 = vpop.f32.mrb[0].mxu0
  %178 = vmatprep.mubr.f32.mxu0 0.0
  %179 = vmatmul.mubr.f32.gmra.mrb[0].mxu0 %v77
  %v180 = vpop.f32.mrb[0].mxu0
  %v181 = vadd.f32 %v52, %v180
  %v182 = vpop.f32.mrb[0].mxu0
  %183 = vdwg.mxu0
  %v184 = vtanh.pop %v146
  %v185 = vtanh.pop %v151
  %v186 = vtanh.pop %v156
  %v187 = vtanh.pop %v161
  %v188 = vtanh.pop %v166
  %v189 = vtanh.pop %v171
  %v190 = vtanh.pop %v176
  %v191 = vtanh.pop %v181
  %v192 = vld [vmem:[%s4] sm:$0xff]
  %v193 = vld [vmem:[%s4 + $0x8] sm:$0xff]
  %v194 = vld [vmem:[%s4 + $0x10] sm:$0xff]
  %v195 = vld [vmem:[%s4 + $0x18] sm:$0xff]
  %v196 = vld [vmem:[%s5] sm:$0x1]
  %v198 = vlaneseq
  %v199 = vshrl.u32 %v198, 7
  %v200 = vsub.s32 0, %v199
  %v201 = vrot.slane %v196, %v200
  %vm203 = vcmask 261120
  %v205 = vsel %vm203, %v184, 0
  %v208 = vsel %vm203, %v185, 0
  %v211 = vsel %vm203, %v186, 0
  %v214 = vsel %vm203, %v187, 0
  %v217 = vsel %vm203, %v188, 0
  %v220 = vsel %vm203, %v189, 0
  %v223 = vsel %vm203, %v190, 0
  %v226 = vsel %vm203, %v191, 0
  %228 = vmatprep.subr.mxu0 0.0
  %229 = vmatpush1.msra.mxu0 %v192
  %230 = vmatprep.subr.mxu0 0.0
  %231 = vmatpush1.msra.mxu0 %v193
  %232 = vmatprep.subr.mxu0 0.0
  %233 = vmatpush1.msra.mxu0 %v194
  %234 = vmatprep.subr.mxu0 0.0
  %235 = vmatpush1.msra.mxu0 %v195
  %236 = vmatprep.subr.mxu0 0.0
  %237 = vmatpush1.msra.mxu0 0.0
  %238 = vmatprep.subr.mxu0 0.0
  %239 = vmatpush1.msra.mxu0 0.0
  %240 = vmatprep.subr.mxu0 0.0
  %241 = vmatpush1.msra.mxu0 0.0
  %242 = vmatprep.subr.mxu0 0.0
  %243 = vmatpush1.msra.mxu0 0.0
  %244 = vmatprep.subr.mxu0 0.0
  %245 = vmatpush1.msra.mxu0 0.0
  %246 = vmatprep.subr.mxu0 0.0
  %247 = vmatpush1.msra.mxu0 0.0
  %248 = vmatprep.subr.mxu0 0.0
  %249 = vmatpush1.msra.mxu0 0.0
  %250 = vmatprep.subr.mxu0 0.0
  %251 = vmatpush1.msra.mxu0 0.0
  %252 = vmatprep.subr.mxu0 0.0
  %253 = vmatpush1.msra.mxu0 0.0
  %254 = vmatprep.subr.mxu0 0.0
  %255 = vmatpush1.msra.mxu0 0.0
  %256 = vmatprep.subr.mxu0 0.0
  %257 = vmatpush1.msra.mxu0 0.0
  %258 = vmatprep.subr.mxu0 0.0
  %259 = vmatpush1.msra.mxu0 0.0
  %260 = vmatprep.subr.mxu0 0.0
  %261 = vmatpush1.msra.mxu0 0.0
  %262 = vmatprep.subr.mxu0 0.0
  %263 = vmatpush1.msra.mxu0 0.0
  %264 = vmatprep.subr.mxu0 0.0
  %265 = vmatpush1.msra.mxu0 0.0
  %266 = vmatprep.subr.mxu0 0.0
  %267 = vmatpush1.msra.mxu0 0.0
  %268 = vmatprep.subr.mxu0 0.0
  %269 = vmatpush1.msra.mxu0 0.0
  %270 = vmatprep.subr.mxu0 0.0
  %271 = vmatpush1.msra.mxu0 0.0
  %272 = vmatprep.subr.mxu0 0.0
  %273 = vmatpush1.msra.mxu0 0.0
  %274 = vmatprep.subr.mxu0 0.0
  %275 = vmatpush1.msra.mxu0 0.0
  %276 = vmatprep.subr.mxu0 0.0
  %277 = vmatpush1.msra.mxu0 0.0
  %278 = vmatprep.subr.mxu0 0.0
  %279 = vmatpush1.msra.mxu0 0.0
  %280 = vmatprep.subr.mxu0 0.0
  %281 = vmatpush1.msra.mxu0 0.0
  %282 = vmatprep.subr.mxu0 0.0
  %283 = vmatpush1.msra.mxu0 0.0
  %284 = vmatprep.subr.mxu0 0.0
  %285 = vmatpush1.msra.mxu0 0.0
  %286 = vmatprep.subr.mxu0 0.0
  %287 = vmatpush1.msra.mxu0 0.0
  %288 = vmatprep.subr.mxu0 0.0
  %289 = vmatpush1.msra.mxu0 0.0
  %290 = vmatprep.subr.mxu0 0.0
  %291 = vmatpush1.msra.mxu0 0.0
  %292 = vmatprep.mubr.f32.mxu0 0.0
  %293 = vmatmul.mubr.f32.gmra.mrb[0].mxu0 %v205
  %v294 = vpop.f32.mrb[0].mxu0
  %v295 = vadd.f32 %v201, %v294
  %v296 = vpop.f32.mrb[0].mxu0
  %297 = vmatprep.mubr.f32.mxu0 0.0
  %298 = vmatmul.mubr.f32.gmra.mrb[0].mxu0 %v208
  %v299 = vpop.f32.mrb[0].mxu0
  %v300 = vadd.f32 %v201, %v299
  %v301 = vpop.f32.mrb[0].mxu0
  %302 = vmatprep.mubr.f32.mxu0 0.0
  %303 = vmatmul.mubr.f32.gmra.mrb[0].mxu0 %v211
  %v304 = vpop.f32.mrb[0].mxu0
  %v305 = vadd.f32 %v201, %v304
  %v306 = vpop.f32.mrb[0].mxu0
  %307 = vmatprep.mubr.f32.mxu0 0.0
  %308 = vmatmul.mubr.f32.gmra.mrb[0].mxu0 %v214
  %v309 = vpop.f32.mrb[0].mxu0
  %v310 = vadd.f32 %v201, %v309
  %v311 = vpop.f32.mrb[0].mxu0
  %312 = vmatprep.mubr.f32.mxu0 0.0
  %313 = vmatmul.mubr.f32.gmra.mrb[0].mxu0 %v217
  %v314 = vpop.f32.mrb[0].mxu0
  %v315 = vadd.f32 %v201, %v314
  %v316 = vpop.f32.mrb[0].mxu0
  %317 = vmatprep.mubr.f32.mxu0 0.0
  %318 = vmatmul.mubr.f32.gmra.mrb[0].mxu0 %v220
  %v319 = vpop.f32.mrb[0].mxu0
  %v320 = vadd.f32 %v201, %v319
  %v321 = vpop.f32.mrb[0].mxu0
  %322 = vmatprep.mubr.f32.mxu0 0.0
  %323 = vmatmul.mubr.f32.gmra.mrb[0].mxu0 %v223
  %v324 = vpop.f32.mrb[0].mxu0
  %v325 = vadd.f32 %v201, %v324
  %v326 = vpop.f32.mrb[0].mxu0
  %327 = vmatprep.mubr.f32.mxu0 0.0
  %328 = vmatmul.mubr.f32.gmra.mrb[0].mxu0 %v226
  %v329 = vpop.f32.mrb[0].mxu0
  %v330 = vadd.f32 %v201, %v329
  %v331 = vpop.f32.mrb[0].mxu0
  %332 = vdwg.mxu0
  %v333 = vld [vmem:[%s6] sm:$0xff]
  %v334 = vld [vmem:[%s6 + $0x8] sm:$0xff]
  %v335 = vld [vmem:[%s6 + $0x10] sm:$0xff]
  %v336 = vld [vmem:[%s6 + $0x18] sm:$0xff]
  %v337 = vld [vmem:[%s7] sm:$0x1]
  %v338 = vld [vmem:[%s1] sm:$0xff]
  %v340 = vlaneseq
  %v341 = vshrl.u32 %v340, 7
  %v342 = vsub.s32 0, %v341
  %v343 = vrot.slane %v337, %v342
  %v346 = vsel %vm203, %v338, 0
  %348 = vmatprep.subr.mxu0 0.0
  %349 = vmatpush1.msra.mxu0 %v333
  %350 = vmatprep.subr.mxu0 0.0
  %351 = vmatpush1.msra.mxu0 %v334
  %352 = vmatprep.subr.mxu0 0.0
  %353 = vmatpush1.msra.mxu0 %v335
  %354 = vmatprep.subr.mxu0 0.0
  %355 = vmatpush1.msra.mxu0 %v336
  %356 = vmatprep.subr.mxu0 0.0
  %357 = vmatpush1.msra.mxu0 0.0
  %358 = vmatprep.subr.mxu0 0.0
  %359 = vmatpush1.msra.mxu0 0.0
  %360 = vmatprep.subr.mxu0 0.0
  %361 = vmatpush1.msra.mxu0 0.0
  %362 = vmatprep.subr.mxu0 0.0
  %363 = vmatpush1.msra.mxu0 0.0
  %364 = vmatprep.subr.mxu0 0.0
  %365 = vmatpush1.msra.mxu0 0.0
  %366 = vmatprep.subr.mxu0 0.0
  %367 = vmatpush1.msra.mxu0 0.0
  %368 = vmatprep.subr.mxu0 0.0
  %369 = vmatpush1.msra.mxu0 0.0
  %370 = vmatprep.subr.mxu0 0.0
  %371 = vmatpush1.msra.mxu0 0.0
  %372 = vmatprep.subr.mxu0 0.0
  %373 = vmatpush1.msra.mxu0 0.0
  %374 = vmatprep.subr.mxu0 0.0
  %375 = vmatpush1.msra.mxu0 0.0
  %376 = vmatprep.subr.mxu0 0.0
  %377 = vmatpush1.msra.mxu0 0.0
  %378 = vmatprep.subr.mxu0 0.0
  %379 = vmatpush1.msra.mxu0 0.0
  %380 = vmatprep.subr.mxu0 0.0
  %381 = vmatpush1.msra.mxu0 0.0
  %382 = vmatprep.subr.mxu0 0.0
  %383 = vmatpush1.msra.mxu0 0.0
  %384 = vmatprep.subr.mxu0 0.0
  %385 = vmatpush1.msra.mxu0 0.0
  %386 = vmatprep.subr.mxu0 0.0
  %387 = vmatpush1.msra.mxu0 0.0
  %388 = vmatprep.subr.mxu0 0.0
  %389 = vmatpush1.msra.mxu0 0.0
  %390 = vmatprep.subr.mxu0 0.0
  %391 = vmatpush1.msra.mxu0 0.0
  %392 = vmatprep.subr.mxu0 0.0
  %393 = vmatpush1.msra.mxu0 0.0
  %394 = vmatprep.subr.mxu0 0.0
  %395 = vmatpush1.msra.mxu0 0.0
  %396 = vmatprep.subr.mxu0 0.0
  %397 = vmatpush1.msra.mxu0 0.0
  %398 = vmatprep.subr.mxu0 0.0
  %399 = vmatpush1.msra.mxu0 0.0
  %400 = vmatprep.subr.mxu0 0.0
  %401 = vmatpush1.msra.mxu0 0.0
  %402 = vmatprep.subr.mxu0 0.0
  %403 = vmatpush1.msra.mxu0 0.0
  %404 = vmatprep.subr.mxu0 0.0
  %405 = vmatpush1.msra.mxu0 0.0
  %406 = vmatprep.subr.mxu0 0.0
  %407 = vmatpush1.msra.mxu0 0.0
  %408 = vmatprep.subr.mxu0 0.0
  %409 = vmatpush1.msra.mxu0 0.0
  %410 = vmatprep.subr.mxu0 0.0
  %411 = vmatpush1.msra.mxu0 0.0
  %412 = vmatprep.mubr.f32.mxu0 0.0
  %413 = vmatmul.mubr.f32.gmra.mrb[0].mxu0 %v346
  %v414 = vpop.f32.mrb[0].mxu0
  %v415 = vadd.f32 %v343, %v414
  %v416 = vpop.f32.mrb[0].mxu0
  %417 = vdwg.mxu0
  %v418 = vadd.f32 %v295, %v415
  %v419 = vxor.u32 %v418, 2147483648
  %v420 = vmul.f32 %v419, 1.442695
  %v421 = vpow.pop %v420
  %v422 = vadd.f32 %v421, 1.0
  %v423 = vrcp.pop %v422
  %v424 = vmul.f32 1.0, %v423
  %426 = vrot.lane.b32.xlu0 %v415, 64
  %v427 = vpop.permute.xlu0 %426
  %v429 = vmul.f32 %v424, %v427
  %431 = vrot.lane.b32.xlu0 %v429, 64
  %v432 = vpop.permute.xlu0 %431
  %v434 = vadd.f32 %v295, %v432
  %v435 = vtanh.pop %v434
  %v436 = vsub.f32 1.0, %v424
  %438 = vrot.lane.b32.xlu0 %v435, 96
  %v439 = vpop.permute.xlu0 %438
  %v441 = vmul.f32 %v436, %v439
  %442 = vrot.lane.b32.xlu0 %v338, 32
  %v443 = vpop.permute.xlu0 %442
  %v445 = vmul.f32 %v424, %v443
  %v446 = vadd.f32 %v441, %v445
  %448 = vrot.lane.b32.xlu0 %v446, 96
  %v449 = vpop.permute.xlu0 %448
  %v450 = vsel %vm203, %v449, 0
  %452 = vmatprep.subr.mxu0 0.0
  %453 = vmatpush1.msra.mxu0 %v333
  %454 = vmatprep.subr.mxu0 0.0
  %455 = vmatpush1.msra.mxu0 %v334
  %456 = vmatprep.subr.mxu0 0.0
  %457 = vmatpush1.msra.mxu0 %v335
  %458 = vmatprep.subr.mxu0 0.0
  %459 = vmatpush1.msra.mxu0 %v336
  %460 = vmatprep.subr.mxu0 0.0
  %461 = vmatpush1.msra.mxu0 0.0
  %462 = vmatprep.subr.mxu0 0.0
  %463 = vmatpush1.msra.mxu0 0.0
  %464 = vmatprep.subr.mxu0 0.0
  %465 = vmatpush1.msra.mxu0 0.0
  %466 = vmatprep.subr.mxu0 0.0
  %467 = vmatpush1.msra.mxu0 0.0
  %468 = vmatprep.subr.mxu0 0.0
  %469 = vmatpush1.msra.mxu0 0.0
  %470 = vmatprep.subr.mxu0 0.0
  %471 = vmatpush1.msra.mxu0 0.0
  %472 = vmatprep.subr.mxu0 0.0
  %473 = vmatpush1.msra.mxu0 0.0
  %474 = vmatprep.subr.mxu0 0.0
  %475 = vmatpush1.msra.mxu0 0.0
  %476 = vmatprep.subr.mxu0 0.0
  %477 = vmatpush1.msra.mxu0 0.0
  %478 = vmatprep.subr.mxu0 0.0
  %479 = vmatpush1.msra.mxu0 0.0
  %480 = vmatprep.subr.mxu0 0.0
  %481 = vmatpush1.msra.mxu0 0.0
  %482 = vmatprep.subr.mxu0 0.0
  %483 = vmatpush1.msra.mxu0 0.0
  %484 = vmatprep.subr.mxu0 0.0
  %485 = vmatpush1.msra.mxu0 0.0
  %486 = vmatprep.subr.mxu0 0.0
  %487 = vmatpush1.msra.mxu0 0.0
  %488 = vmatprep.subr.mxu0 0.0
  %489 = vmatpush1.msra.mxu0 0.0
  %490 = vmatprep.subr.mxu0 0.0
  %491 = vmatpush1.msra.mxu0 0.0
  %492 = vmatprep.subr.mxu0 0.0
  %493 = vmatpush1.msra.mxu0 0.0
  %494 = vmatprep.subr.mxu0 0.0
  %495 = vmatpush1.msra.mxu0 0.0
  %496 = vmatprep.subr.mxu0 0.0
  %497 = vmatpush1.msra.mxu0 0.0
  %498 = vmatprep.subr.mxu0 0.0
  %499 = vmatpush1.msra.mxu0 0.0
  %500 = vmatprep.subr.mxu0 0.0
  %501 = vmatpush1.msra.mxu0 0.0
  %502 = vmatprep.subr.mxu0 0.0
  %503 = vmatpush1.msra.mxu0 0.0
  %504 = vmatprep.subr.mxu0 0.0
  %505 = vmatpush1.msra.mxu0 0.0
  %506 = vmatprep.subr.mxu0 0.0
  %507 = vmatpush1.msra.mxu0 0.0
  %508 = vmatprep.subr.mxu0 0.0
  %509 = vmatpush1.msra.mxu0 0.0
  %510 = vmatprep.subr.mxu0 0.0
  %511 = vmatpush1.msra.mxu0 0.0
  %512 = vmatprep.subr.mxu0 0.0
  %513 = vmatpush1.msra.mxu0 0.0
  %514 = vmatprep.subr.mxu0 0.0
  %515 = vmatpush1.msra.mxu0 0.0
  %516 = vmatprep.mubr.f32.mxu0 0.0
  %517 = vmatmul.mubr.f32.gmra.mrb[0].mxu0 %v450
  %v518 = vpop.f32.mrb[0].mxu0
  %v519 = vadd.f32 %v343, %v518
  %v520 = vpop.f32.mrb[0].mxu0
  %521 = vdwg.mxu0
  %v522 = vadd.f32 %v300, %v519
  %v523 = vxor.u32 %v522, 2147483648
  %v524 = vmul.f32 %v523, 1.442695
  %v525 = vpow.pop %v524
  %v526 = vadd.f32 %v525, 1.0
  %v527 = vrcp.pop %v526
  %v528 = vmul.f32 1.0, %v527
  %530 = vrot.lane.b32.xlu0 %v519, 64
  %v531 = vpop.permute.xlu0 %530
  %v533 = vmul.f32 %v528, %v531
  %535 = vrot.lane.b32.xlu0 %v533, 64
  %v536 = vpop.permute.xlu0 %535
  %v538 = vadd.f32 %v300, %v536
  %v539 = vtanh.pop %v538
  %v540 = vsub.f32 1.0, %v528
  %542 = vrot.lane.b32.xlu0 %v539, 96
  %v543 = vpop.permute.xlu0 %542
  %v545 = vmul.f32 %v540, %v543
  %v546 = vmul.f32 %v528, %v446
  %v547 = vadd.f32 %v545, %v546
  %549 = vrot.lane.b32.xlu0 %v547, 96
  %v550 = vpop.permute.xlu0 %549
  %v551 = vsel %vm203, %v550, 0
  %553 = vmatprep.subr.mxu0 0.0
  %554 = vmatpush1.msra.mxu0 %v333
  %555 = vmatprep.subr.mxu0 0.0
  %556 = vmatpush1.msra.mxu0 %v334
  %557 = vmatprep.subr.mxu0 0.0
  %558 = vmatpush1.msra.mxu0 %v335
  %559 = vmatprep.subr.mxu0 0.0
  %560 = vmatpush1.msra.mxu0 %v336
  %561 = vmatprep.subr.mxu0 0.0
  %562 = vmatpush1.msra.mxu0 0.0
  %563 = vmatprep.subr.mxu0 0.0
  %564 = vmatpush1.msra.mxu0 0.0
  %565 = vmatprep.subr.mxu0 0.0
  %566 = vmatpush1.msra.mxu0 0.0
  %567 = vmatprep.subr.mxu0 0.0
  %568 = vmatpush1.msra.mxu0 0.0
  %569 = vmatprep.subr.mxu0 0.0
  %570 = vmatpush1.msra.mxu0 0.0
  %571 = vmatprep.subr.mxu0 0.0
  %572 = vmatpush1.msra.mxu0 0.0
  %573 = vmatprep.subr.mxu0 0.0
  %574 = vmatpush1.msra.mxu0 0.0
  %575 = vmatprep.subr.mxu0 0.0
  %576 = vmatpush1.msra.mxu0 0.0
  %577 = vmatprep.subr.mxu0 0.0
  %578 = vmatpush1.msra.mxu0 0.0
  %579 = vmatprep.subr.mxu0 0.0
  %580 = vmatpush1.msra.mxu0 0.0
  %581 = vmatprep.subr.mxu0 0.0
  %582 = vmatpush1.msra.mxu0 0.0
  %583 = vmatprep.subr.mxu0 0.0
  %584 = vmatpush1.msra.mxu0 0.0
  %585 = vmatprep.subr.mxu0 0.0
  %586 = vmatpush1.msra.mxu0 0.0
  %587 = vmatprep.subr.mxu0 0.0
  %588 = vmatpush1.msra.mxu0 0.0
  %589 = vmatprep.subr.mxu0 0.0
  %590 = vmatpush1.msra.mxu0 0.0
  %591 = vmatprep.subr.mxu0 0.0
  %592 = vmatpush1.msra.mxu0 0.0
  %593 = vmatprep.subr.mxu0 0.0
  %594 = vmatpush1.msra.mxu0 0.0
  %595 = vmatprep.subr.mxu0 0.0
  %596 = vmatpush1.msra.mxu0 0.0
  %597 = vmatprep.subr.mxu0 0.0
  %598 = vmatpush1.msra.mxu0 0.0
  %599 = vmatprep.subr.mxu0 0.0
  %600 = vmatpush1.msra.mxu0 0.0
  %601 = vmatprep.subr.mxu0 0.0
  %602 = vmatpush1.msra.mxu0 0.0
  %603 = vmatprep.subr.mxu0 0.0
  %604 = vmatpush1.msra.mxu0 0.0
  %605 = vmatprep.subr.mxu0 0.0
  %606 = vmatpush1.msra.mxu0 0.0
  %607 = vmatprep.subr.mxu0 0.0
  %608 = vmatpush1.msra.mxu0 0.0
  %609 = vmatprep.subr.mxu0 0.0
  %610 = vmatpush1.msra.mxu0 0.0
  %611 = vmatprep.subr.mxu0 0.0
  %612 = vmatpush1.msra.mxu0 0.0
  %613 = vmatprep.subr.mxu0 0.0
  %614 = vmatpush1.msra.mxu0 0.0
  %615 = vmatprep.subr.mxu0 0.0
  %616 = vmatpush1.msra.mxu0 0.0
  %617 = vmatprep.mubr.f32.mxu0 0.0
  %618 = vmatmul.mubr.f32.gmra.mrb[0].mxu0 %v551
  %v619 = vpop.f32.mrb[0].mxu0
  %v620 = vadd.f32 %v343, %v619
  %v621 = vpop.f32.mrb[0].mxu0
  %622 = vdwg.mxu0
  %v623 = vadd.f32 %v305, %v620
  %v624 = vxor.u32 %v623, 2147483648
  %v625 = vmul.f32 %v624, 1.442695
  %v626 = vpow.pop %v625
  %v627 = vadd.f32 %v626, 1.0
  %v628 = vrcp.pop %v627
  %v629 = vmul.f32 1.0, %v628
  %631 = vrot.lane.b32.xlu0 %v620, 64
  %v632 = vpop.permute.xlu0 %631
  %v634 = vmul.f32 %v629, %v632
  %636 = vrot.lane.b32.xlu0 %v634, 64
  %v637 = vpop.permute.xlu0 %636
  %v639 = vadd.f32 %v305, %v637
  %v640 = vtanh.pop %v639
  %v641 = vsub.f32 1.0, %v629
  %643 = vrot.lane.b32.xlu0 %v640, 96
  %v644 = vpop.permute.xlu0 %643
  %v646 = vmul.f32 %v641, %v644
  %v647 = vmul.f32 %v629, %v547
  %v648 = vadd.f32 %v646, %v647
  %650 = vrot.lane.b32.xlu0 %v648, 96
  %v651 = vpop.permute.xlu0 %650
  %v652 = vsel %vm203, %v651, 0
  %654 = vmatprep.subr.mxu0 0.0
  %655 = vmatpush1.msra.mxu0 %v333
  %656 = vmatprep.subr.mxu0 0.0
  %657 = vmatpush1.msra.mxu0 %v334
  %658 = vmatprep.subr.mxu0 0.0
  %659 = vmatpush1.msra.mxu0 %v335
  %660 = vmatprep.subr.mxu0 0.0
  %661 = vmatpush1.msra.mxu0 %v336
  %662 = vmatprep.subr.mxu0 0.0
  %663 = vmatpush1.msra.mxu0 0.0
  %664 = vmatprep.subr.mxu0 0.0
  %665 = vmatpush1.msra.mxu0 0.0
  %666 = vmatprep.subr.mxu0 0.0
  %667 = vmatpush1.msra.mxu0 0.0
  %668 = vmatprep.subr.mxu0 0.0
  %669 = vmatpush1.msra.mxu0 0.0
  %670 = vmatprep.subr.mxu0 0.0
  %671 = vmatpush1.msra.mxu0 0.0
  %672 = vmatprep.subr.mxu0 0.0
  %673 = vmatpush1.msra.mxu0 0.0
  %674 = vmatprep.subr.mxu0 0.0
  %675 = vmatpush1.msra.mxu0 0.0
  %676 = vmatprep.subr.mxu0 0.0
  %677 = vmatpush1.msra.mxu0 0.0
  %678 = vmatprep.subr.mxu0 0.0
  %679 = vmatpush1.msra.mxu0 0.0
  %680 = vmatprep.subr.mxu0 0.0
  %681 = vmatpush1.msra.mxu0 0.0
  %682 = vmatprep.subr.mxu0 0.0
  %683 = vmatpush1.msra.mxu0 0.0
  %684 = vmatprep.subr.mxu0 0.0
  %685 = vmatpush1.msra.mxu0 0.0
  %686 = vmatprep.subr.mxu0 0.0
  %687 = vmatpush1.msra.mxu0 0.0
  %688 = vmatprep.subr.mxu0 0.0
  %689 = vmatpush1.msra.mxu0 0.0
  %690 = vmatprep.subr.mxu0 0.0
  %691 = vmatpush1.msra.mxu0 0.0
  %692 = vmatprep.subr.mxu0 0.0
  %693 = vmatpush1.msra.mxu0 0.0
  %694 = vmatprep.subr.mxu0 0.0
  %695 = vmatpush1.msra.mxu0 0.0
  %696 = vmatprep.subr.mxu0 0.0
  %697 = vmatpush1.msra.mxu0 0.0
  %698 = vmatprep.subr.mxu0 0.0
  %699 = vmatpush1.msra.mxu0 0.0
  %700 = vmatprep.subr.mxu0 0.0
  %701 = vmatpush1.msra.mxu0 0.0
  %702 = vmatprep.subr.mxu0 0.0
  %703 = vmatpush1.msra.mxu0 0.0
  %704 = vmatprep.subr.mxu0 0.0
  %705 = vmatpush1.msra.mxu0 0.0
  %706 = vmatprep.subr.mxu0 0.0
  %707 = vmatpush1.msra.mxu0 0.0
  %708 = vmatprep.subr.mxu0 0.0
  %709 = vmatpush1.msra.mxu0 0.0
  %710 = vmatprep.subr.mxu0 0.0
  %711 = vmatpush1.msra.mxu0 0.0
  %712 = vmatprep.subr.mxu0 0.0
  %713 = vmatpush1.msra.mxu0 0.0
  %714 = vmatprep.subr.mxu0 0.0
  %715 = vmatpush1.msra.mxu0 0.0
  %716 = vmatprep.subr.mxu0 0.0
  %717 = vmatpush1.msra.mxu0 0.0
  %718 = vmatprep.mubr.f32.mxu0 0.0
  %719 = vmatmul.mubr.f32.gmra.mrb[0].mxu0 %v652
  %v720 = vpop.f32.mrb[0].mxu0
  %v721 = vadd.f32 %v343, %v720
  %v722 = vpop.f32.mrb[0].mxu0
  %723 = vdwg.mxu0
  %v724 = vadd.f32 %v310, %v721
  %v725 = vxor.u32 %v724, 2147483648
  %v726 = vmul.f32 %v725, 1.442695
  %v727 = vpow.pop %v726
  %v728 = vadd.f32 %v727, 1.0
  %v729 = vrcp.pop %v728
  %v730 = vmul.f32 1.0, %v729
  %732 = vrot.lane.b32.xlu0 %v721, 64
  %v733 = vpop.permute.xlu0 %732
  %v735 = vmul.f32 %v730, %v733
  %737 = vrot.lane.b32.xlu0 %v735, 64
  %v738 = vpop.permute.xlu0 %737
  %v740 = vadd.f32 %v310, %v738
  %v741 = vtanh.pop %v740
  %v742 = vsub.f32 1.0, %v730
  %744 = vrot.lane.b32.xlu0 %v741, 96
  %v745 = vpop.permute.xlu0 %744
  %v747 = vmul.f32 %v742, %v745
  %v748 = vmul.f32 %v730, %v648
  %v749 = vadd.f32 %v747, %v748
  %751 = vrot.lane.b32.xlu0 %v749, 96
  %v752 = vpop.permute.xlu0 %751
  %v753 = vsel %vm203, %v752, 0
  %755 = vmatprep.subr.mxu0 0.0
  %756 = vmatpush1.msra.mxu0 %v333
  %757 = vmatprep.subr.mxu0 0.0
  %758 = vmatpush1.msra.mxu0 %v334
  %759 = vmatprep.subr.mxu0 0.0
  %760 = vmatpush1.msra.mxu0 %v335
  %761 = vmatprep.subr.mxu0 0.0
  %762 = vmatpush1.msra.mxu0 %v336
  %763 = vmatprep.subr.mxu0 0.0
  %764 = vmatpush1.msra.mxu0 0.0
  %765 = vmatprep.subr.mxu0 0.0
  %766 = vmatpush1.msra.mxu0 0.0
  %767 = vmatprep.subr.mxu0 0.0
  %768 = vmatpush1.msra.mxu0 0.0
  %769 = vmatprep.subr.mxu0 0.0
  %770 = vmatpush1.msra.mxu0 0.0
  %771 = vmatprep.subr.mxu0 0.0
  %772 = vmatpush1.msra.mxu0 0.0
  %773 = vmatprep.subr.mxu0 0.0
  %774 = vmatpush1.msra.mxu0 0.0
  %775 = vmatprep.subr.mxu0 0.0
  %776 = vmatpush1.msra.mxu0 0.0
  %777 = vmatprep.subr.mxu0 0.0
  %778 = vmatpush1.msra.mxu0 0.0
  %779 = vmatprep.subr.mxu0 0.0
  %780 = vmatpush1.msra.mxu0 0.0
  %781 = vmatprep.subr.mxu0 0.0
  %782 = vmatpush1.msra.mxu0 0.0
  %783 = vmatprep.subr.mxu0 0.0
  %784 = vmatpush1.msra.mxu0 0.0
  %785 = vmatprep.subr.mxu0 0.0
  %786 = vmatpush1.msra.mxu0 0.0
  %787 = vmatprep.subr.mxu0 0.0
  %788 = vmatpush1.msra.mxu0 0.0
  %789 = vmatprep.subr.mxu0 0.0
  %790 = vmatpush1.msra.mxu0 0.0
  %791 = vmatprep.subr.mxu0 0.0
  %792 = vmatpush1.msra.mxu0 0.0
  %793 = vmatprep.subr.mxu0 0.0
  %794 = vmatpush1.msra.mxu0 0.0
  %795 = vmatprep.subr.mxu0 0.0
  %796 = vmatpush1.msra.mxu0 0.0
  %797 = vmatprep.subr.mxu0 0.0
  %798 = vmatpush1.msra.mxu0 0.0
  %799 = vmatprep.subr.mxu0 0.0
  %800 = vmatpush1.msra.mxu0 0.0
  %801 = vmatprep.subr.mxu0 0.0
  %802 = vmatpush1.msra.mxu0 0.0
  %803 = vmatprep.subr.mxu0 0.0
  %804 = vmatpush1.msra.mxu0 0.0
  %805 = vmatprep.subr.mxu0 0.0
  %806 = vmatpush1.msra.mxu0 0.0
  %807 = vmatprep.subr.mxu0 0.0
  %808 = vmatpush1.msra.mxu0 0.0
  %809 = vmatprep.subr.mxu0 0.0
  %810 = vmatpush1.msra.mxu0 0.0
  %811 = vmatprep.subr.mxu0 0.0
  %812 = vmatpush1.msra.mxu0 0.0
  %813 = vmatprep.subr.mxu0 0.0
  %814 = vmatpush1.msra.mxu0 0.0
  %815 = vmatprep.subr.mxu0 0.0
  %816 = vmatpush1.msra.mxu0 0.0
  %817 = vmatprep.subr.mxu0 0.0
  %818 = vmatpush1.msra.mxu0 0.0
  %819 = vmatprep.mubr.f32.mxu0 0.0
  %820 = vmatmul.mubr.f32.gmra.mrb[0].mxu0 %v753
  %v821 = vpop.f32.mrb[0].mxu0
  %v822 = vadd.f32 %v343, %v821
  %v823 = vpop.f32.mrb[0].mxu0
  %824 = vdwg.mxu0
  %v825 = vadd.f32 %v315, %v822
  %v826 = vxor.u32 %v825, 2147483648
  %v827 = vmul.f32 %v826, 1.442695
  %v828 = vpow.pop %v827
  %v829 = vadd.f32 %v828, 1.0
  %v830 = vrcp.pop %v829
  %v831 = vmul.f32 1.0, %v830
  %833 = vrot.lane.b32.xlu0 %v822, 64
  %v834 = vpop.permute.xlu0 %833
  %v836 = vmul.f32 %v831, %v834
  %838 = vrot.lane.b32.xlu0 %v836, 64
  %v839 = vpop.permute.xlu0 %838
  %v841 = vadd.f32 %v315, %v839
  %v842 = vtanh.pop %v841
  %v843 = vsub.f32 1.0, %v831
  %845 = vrot.lane.b32.xlu0 %v842, 96
  %v846 = vpop.permute.xlu0 %845
  %v848 = vmul.f32 %v843, %v846
  %v849 = vmul.f32 %v831, %v749
  %v850 = vadd.f32 %v848, %v849
  %852 = vrot.lane.b32.xlu0 %v850, 96
  %v853 = vpop.permute.xlu0 %852
  %v854 = vsel %vm203, %v853, 0
  %856 = vmatprep.subr.mxu0 0.0
  %857 = vmatpush1.msra.mxu0 %v333
  %858 = vmatprep.subr.mxu0 0.0
  %859 = vmatpush1.msra.mxu0 %v334
  %860 = vmatprep.subr.mxu0 0.0
  %861 = vmatpush1.msra.mxu0 %v335
  %862 = vmatprep.subr.mxu0 0.0
  %863 = vmatpush1.msra.mxu0 %v336
  %864 = vmatprep.subr.mxu0 0.0
  %865 = vmatpush1.msra.mxu0 0.0
  %866 = vmatprep.subr.mxu0 0.0
  %867 = vmatpush1.msra.mxu0 0.0
  %868 = vmatprep.subr.mxu0 0.0
  %869 = vmatpush1.msra.mxu0 0.0
  %870 = vmatprep.subr.mxu0 0.0
  %871 = vmatpush1.msra.mxu0 0.0
  %872 = vmatprep.subr.mxu0 0.0
  %873 = vmatpush1.msra.mxu0 0.0
  %874 = vmatprep.subr.mxu0 0.0
  %875 = vmatpush1.msra.mxu0 0.0
  %876 = vmatprep.subr.mxu0 0.0
  %877 = vmatpush1.msra.mxu0 0.0
  %878 = vmatprep.subr.mxu0 0.0
  %879 = vmatpush1.msra.mxu0 0.0
  %880 = vmatprep.subr.mxu0 0.0
  %881 = vmatpush1.msra.mxu0 0.0
  %882 = vmatprep.subr.mxu0 0.0
  %883 = vmatpush1.msra.mxu0 0.0
  %884 = vmatprep.subr.mxu0 0.0
  %885 = vmatpush1.msra.mxu0 0.0
  %886 = vmatprep.subr.mxu0 0.0
  %887 = vmatpush1.msra.mxu0 0.0
  %888 = vmatprep.subr.mxu0 0.0
  %889 = vmatpush1.msra.mxu0 0.0
  %890 = vmatprep.subr.mxu0 0.0
  %891 = vmatpush1.msra.mxu0 0.0
  %892 = vmatprep.subr.mxu0 0.0
  %893 = vmatpush1.msra.mxu0 0.0
  %894 = vmatprep.subr.mxu0 0.0
  %895 = vmatpush1.msra.mxu0 0.0
  %896 = vmatprep.subr.mxu0 0.0
  %897 = vmatpush1.msra.mxu0 0.0
  %898 = vmatprep.subr.mxu0 0.0
  %899 = vmatpush1.msra.mxu0 0.0
  %900 = vmatprep.subr.mxu0 0.0
  %901 = vmatpush1.msra.mxu0 0.0
  %902 = vmatprep.subr.mxu0 0.0
  %903 = vmatpush1.msra.mxu0 0.0
  %904 = vmatprep.subr.mxu0 0.0
  %905 = vmatpush1.msra.mxu0 0.0
  %906 = vmatprep.subr.mxu0 0.0
  %907 = vmatpush1.msra.mxu0 0.0
  %908 = vmatprep.subr.mxu0 0.0
  %909 = vmatpush1.msra.mxu0 0.0
  %910 = vmatprep.subr.mxu0 0.0
  %911 = vmatpush1.msra.mxu0 0.0
  %912 = vmatprep.subr.mxu0 0.0
  %913 = vmatpush1.msra.mxu0 0.0
  %914 = vmatprep.subr.mxu0 0.0
  %915 = vmatpush1.msra.mxu0 0.0
  %916 = vmatprep.subr.mxu0 0.0
  %917 = vmatpush1.msra.mxu0 0.0
  %918 = vmatprep.subr.mxu0 0.0
  %919 = vmatpush1.msra.mxu0 0.0
  %920 = vmatprep.mubr.f32.mxu0 0.0
  %921 = vmatmul.mubr.f32.gmra.mrb[0].mxu0 %v854
  %v922 = vpop.f32.mrb[0].mxu0
  %v923 = vadd.f32 %v343, %v922
  %v924 = vpop.f32.mrb[0].mxu0
  %925 = vdwg.mxu0
  %v926 = vadd.f32 %v320, %v923
  %v927 = vxor.u32 %v926, 2147483648
  %v928 = vmul.f32 %v927, 1.442695
  %v929 = vpow.pop %v928
  %v930 = vadd.f32 %v929, 1.0
  %v931 = vrcp.pop %v930
  %v932 = vmul.f32 1.0, %v931
  %934 = vrot.lane.b32.xlu0 %v923, 64
  %v935 = vpop.permute.xlu0 %934
  %v937 = vmul.f32 %v932, %v935
  %939 = vrot.lane.b32.xlu0 %v937, 64
  %v940 = vpop.permute.xlu0 %939
  %v942 = vadd.f32 %v320, %v940
  %v943 = vtanh.pop %v942
  %v944 = vsub.f32 1.0, %v932
  %946 = vrot.lane.b32.xlu0 %v943, 96
  %v947 = vpop.permute.xlu0 %946
  %v949 = vmul.f32 %v944, %v947
  %v950 = vmul.f32 %v932, %v850
  %v951 = vadd.f32 %v949, %v950
  %953 = vrot.lane.b32.xlu0 %v951, 96
  %v954 = vpop.permute.xlu0 %953
  %v955 = vsel %vm203, %v954, 0
  %957 = vmatprep.subr.mxu0 0.0
  %958 = vmatpush1.msra.mxu0 %v333
  %959 = vmatprep.subr.mxu0 0.0
  %960 = vmatpush1.msra.mxu0 %v334
  %961 = vmatprep.subr.mxu0 0.0
  %962 = vmatpush1.msra.mxu0 %v335
  %963 = vmatprep.subr.mxu0 0.0
  %964 = vmatpush1.msra.mxu0 %v336
  %965 = vmatprep.subr.mxu0 0.0
  %966 = vmatpush1.msra.mxu0 0.0
  %967 = vmatprep.subr.mxu0 0.0
  %968 = vmatpush1.msra.mxu0 0.0
  %969 = vmatprep.subr.mxu0 0.0
  %970 = vmatpush1.msra.mxu0 0.0
  %971 = vmatprep.subr.mxu0 0.0
  %972 = vmatpush1.msra.mxu0 0.0
  %973 = vmatprep.subr.mxu0 0.0
  %974 = vmatpush1.msra.mxu0 0.0
  %975 = vmatprep.subr.mxu0 0.0
  %976 = vmatpush1.msra.mxu0 0.0
  %977 = vmatprep.subr.mxu0 0.0
  %978 = vmatpush1.msra.mxu0 0.0
  %979 = vmatprep.subr.mxu0 0.0
  %980 = vmatpush1.msra.mxu0 0.0
  %981 = vmatprep.subr.mxu0 0.0
  %982 = vmatpush1.msra.mxu0 0.0
  %983 = vmatprep.subr.mxu0 0.0
  %984 = vmatpush1.msra.mxu0 0.0
  %985 = vmatprep.subr.mxu0 0.0
  %986 = vmatpush1.msra.mxu0 0.0
  %987 = vmatprep.subr.mxu0 0.0
  %988 = vmatpush1.msra.mxu0 0.0
  %989 = vmatprep.subr.mxu0 0.0
  %990 = vmatpush1.msra.mxu0 0.0
  %991 = vmatprep.subr.mxu0 0.0
  %992 = vmatpush1.msra.mxu0 0.0
  %993 = vmatprep.subr.mxu0 0.0
  %994 = vmatpush1.msra.mxu0 0.0
  %995 = vmatprep.subr.mxu0 0.0
  %996 = vmatpush1.msra.mxu0 0.0
  %997 = vmatprep.subr.mxu0 0.0
  %998 = vmatpush1.msra.mxu0 0.0
  %999 = vmatprep.subr.mxu0 0.0
  %1000 = vmatpush1.msra.mxu0 0.0
  %1001 = vmatprep.subr.mxu0 0.0
  %1002 = vmatpush1.msra.mxu0 0.0
  %1003 = vmatprep.subr.mxu0 0.0
  %1004 = vmatpush1.msra.mxu0 0.0
  %1005 = vmatprep.subr.mxu0 0.0
  %1006 = vmatpush1.msra.mxu0 0.0
  %1007 = vmatprep.subr.mxu0 0.0
  %1008 = vmatpush1.msra.mxu0 0.0
  %1009 = vmatprep.subr.mxu0 0.0
  %1010 = vmatpush1.msra.mxu0 0.0
  %1011 = vmatprep.subr.mxu0 0.0
  %1012 = vmatpush1.msra.mxu0 0.0
  %1013 = vmatprep.subr.mxu0 0.0
  %1014 = vmatpush1.msra.mxu0 0.0
  %1015 = vmatprep.subr.mxu0 0.0
  %1016 = vmatpush1.msra.mxu0 0.0
  %1017 = vmatprep.subr.mxu0 0.0
  %1018 = vmatpush1.msra.mxu0 0.0
  %1019 = vmatprep.subr.mxu0 0.0
  %1020 = vmatpush1.msra.mxu0 0.0
  %1021 = vmatprep.mubr.f32.mxu0 0.0
  %1022 = vmatmul.mubr.f32.gmra.mrb[0].mxu0 %v955
  %v1023 = vpop.f32.mrb[0].mxu0
  %v1024 = vadd.f32 %v343, %v1023
  %v1025 = vpop.f32.mrb[0].mxu0
  %1026 = vdwg.mxu0
  %v1027 = vadd.f32 %v325, %v1024
  %v1028 = vxor.u32 %v1027, 2147483648
  %v1029 = vmul.f32 %v1028, 1.442695
  %v1030 = vpow.pop %v1029
  %v1031 = vadd.f32 %v1030, 1.0
  %v1032 = vrcp.pop %v1031
  %v1033 = vmul.f32 1.0, %v1032
  %1035 = vrot.lane.b32.xlu0 %v1024, 64
  %v1036 = vpop.permute.xlu0 %1035
  %v1038 = vmul.f32 %v1033, %v1036
  %1040 = vrot.lane.b32.xlu0 %v1038, 64
  %v1041 = vpop.permute.xlu0 %1040
  %v1043 = vadd.f32 %v325, %v1041
  %v1044 = vtanh.pop %v1043
  %v1045 = vsub.f32 1.0, %v1033
  %1047 = vrot.lane.b32.xlu0 %v1044, 96
  %v1048 = vpop.permute.xlu0 %1047
  %v1050 = vmul.f32 %v1045, %v1048
  %v1051 = vmul.f32 %v1033, %v951
  %v1052 = vadd.f32 %v1050, %v1051
  %1054 = vrot.lane.b32.xlu0 %v1052, 96
  %v1055 = vpop.permute.xlu0 %1054
  %v1056 = vsel %vm203, %v1055, 0
  %1058 = vmatprep.subr.mxu0 0.0
  %1059 = vmatpush1.msra.mxu0 %v333
  %1060 = vmatprep.subr.mxu0 0.0
  %1061 = vmatpush1.msra.mxu0 %v334
  %1062 = vmatprep.subr.mxu0 0.0
  %1063 = vmatpush1.msra.mxu0 %v335
  %1064 = vmatprep.subr.mxu0 0.0
  %1065 = vmatpush1.msra.mxu0 %v336
  %1066 = vmatprep.subr.mxu0 0.0
  %1067 = vmatpush1.msra.mxu0 0.0
  %1068 = vmatprep.subr.mxu0 0.0
  %1069 = vmatpush1.msra.mxu0 0.0
  %1070 = vmatprep.subr.mxu0 0.0
  %1071 = vmatpush1.msra.mxu0 0.0
  %1072 = vmatprep.subr.mxu0 0.0
  %1073 = vmatpush1.msra.mxu0 0.0
  %1074 = vmatprep.subr.mxu0 0.0
  %1075 = vmatpush1.msra.mxu0 0.0
  %1076 = vmatprep.subr.mxu0 0.0
  %1077 = vmatpush1.msra.mxu0 0.0
  %1078 = vmatprep.subr.mxu0 0.0
  %1079 = vmatpush1.msra.mxu0 0.0
  %1080 = vmatprep.subr.mxu0 0.0
  %1081 = vmatpush1.msra.mxu0 0.0
  %1082 = vmatprep.subr.mxu0 0.0
  %1083 = vmatpush1.msra.mxu0 0.0
  %1084 = vmatprep.subr.mxu0 0.0
  %1085 = vmatpush1.msra.mxu0 0.0
  %1086 = vmatprep.subr.mxu0 0.0
  %1087 = vmatpush1.msra.mxu0 0.0
  %1088 = vmatprep.subr.mxu0 0.0
  %1089 = vmatpush1.msra.mxu0 0.0
  %1090 = vmatprep.subr.mxu0 0.0
  %1091 = vmatpush1.msra.mxu0 0.0
  %1092 = vmatprep.subr.mxu0 0.0
  %1093 = vmatpush1.msra.mxu0 0.0
  %1094 = vmatprep.subr.mxu0 0.0
  %1095 = vmatpush1.msra.mxu0 0.0
  %1096 = vmatprep.subr.mxu0 0.0
  %1097 = vmatpush1.msra.mxu0 0.0
  %1098 = vmatprep.subr.mxu0 0.0
  %1099 = vmatpush1.msra.mxu0 0.0
  %1100 = vmatprep.subr.mxu0 0.0
  %1101 = vmatpush1.msra.mxu0 0.0
  %1102 = vmatprep.subr.mxu0 0.0
  %1103 = vmatpush1.msra.mxu0 0.0
  %1104 = vmatprep.subr.mxu0 0.0
  %1105 = vmatpush1.msra.mxu0 0.0
  %1106 = vmatprep.subr.mxu0 0.0
  %1107 = vmatpush1.msra.mxu0 0.0
  %1108 = vmatprep.subr.mxu0 0.0
  %1109 = vmatpush1.msra.mxu0 0.0
  %1110 = vmatprep.subr.mxu0 0.0
  %1111 = vmatpush1.msra.mxu0 0.0
  %1112 = vmatprep.subr.mxu0 0.0
  %1113 = vmatpush1.msra.mxu0 0.0
  %1114 = vmatprep.subr.mxu0 0.0
  %1115 = vmatpush1.msra.mxu0 0.0
  %1116 = vmatprep.subr.mxu0 0.0
  %1117 = vmatpush1.msra.mxu0 0.0
  %1118 = vmatprep.subr.mxu0 0.0
  %1119 = vmatpush1.msra.mxu0 0.0
  %1120 = vmatprep.subr.mxu0 0.0
  %1121 = vmatpush1.msra.mxu0 0.0
  %1122 = vmatprep.mubr.f32.mxu0 0.0
  %1123 = vmatmul.mubr.f32.gmra.mrb[0].mxu0 %v1056
  %v1124 = vpop.f32.mrb[0].mxu0
  %v1125 = vadd.f32 %v343, %v1124
  %v1126 = vpop.f32.mrb[0].mxu0
  %1127 = vdwg.mxu0
  %v1128 = vadd.f32 %v330, %v1125
  %v1129 = vxor.u32 %v1128, 2147483648
  %v1130 = vmul.f32 %v1129, 1.442695
  %v1131 = vpow.pop %v1130
  %v1132 = vadd.f32 %v1131, 1.0
  %v1133 = vrcp.pop %v1132
  %v1134 = vmul.f32 1.0, %v1133
  %1136 = vrot.lane.b32.xlu0 %v1125, 64
  %v1137 = vpop.permute.xlu0 %1136
  %v1139 = vmul.f32 %v1134, %v1137
  %1141 = vrot.lane.b32.xlu0 %v1139, 64
  %v1142 = vpop.permute.xlu0 %1141
  %v1144 = vadd.f32 %v330, %v1142
  %v1145 = vtanh.pop %v1144
  %v1146 = vsub.f32 1.0, %v1134
  %1148 = vrot.lane.b32.xlu0 %v1145, 96
  %v1149 = vpop.permute.xlu0 %1148
  %v1151 = vmul.f32 %v1146, %v1149
  %v1152 = vmul.f32 %v1134, %v1052
  %v1153 = vadd.f32 %v1151, %v1152
  %v1154 = vld [vmem:[%s8] sm:$0xff]
  %v1155 = vld [vmem:[%s8 + $0x8] sm:$0xff]
  %v1156 = vld [vmem:[%s8 + $0x10] sm:$0xff]
  %v1157 = vld [vmem:[%s8 + $0x18] sm:$0xff]
  %v1158 = vld [vmem:[%s9] sm:$0x1]
  %v1160 = vlaneseq
  %v1161 = vshrl.u32 %v1160, 7
  %v1162 = vsub.s32 0, %v1161
  %v1163 = vrot.slane %v1158, %v1162
  %1166 = vrot.lane.b32.xlu0 %v1153, 96
  %v1167 = vpop.permute.xlu0 %1166
  %v1168 = vsel %vm203, %v1167, 0
  %1170 = vmatprep.subr.mxu0 0.0
  %1171 = vmatpush1.msra.mxu0 %v1154
  %1172 = vmatprep.subr.mxu0 0.0
  %1173 = vmatpush1.msra.mxu0 %v1155
  %1174 = vmatprep.subr.mxu0 0.0
  %1175 = vmatpush1.msra.mxu0 %v1156
  %1176 = vmatprep.subr.mxu0 0.0
  %1177 = vmatpush1.msra.mxu0 %v1157
  %1178 = vmatprep.subr.mxu0 0.0
  %1179 = vmatpush1.msra.mxu0 0.0
  %1180 = vmatprep.subr.mxu0 0.0
  %1181 = vmatpush1.msra.mxu0 0.0
  %1182 = vmatprep.subr.mxu0 0.0
  %1183 = vmatpush1.msra.mxu0 0.0
  %1184 = vmatprep.subr.mxu0 0.0
  %1185 = vmatpush1.msra.mxu0 0.0
  %1186 = vmatprep.subr.mxu0 0.0
  %1187 = vmatpush1.msra.mxu0 0.0
  %1188 = vmatprep.subr.mxu0 0.0
  %1189 = vmatpush1.msra.mxu0 0.0
  %1190 = vmatprep.subr.mxu0 0.0
  %1191 = vmatpush1.msra.mxu0 0.0
  %1192 = vmatprep.subr.mxu0 0.0
  %1193 = vmatpush1.msra.mxu0 0.0
  %1194 = vmatprep.subr.mxu0 0.0
  %1195 = vmatpush1.msra.mxu0 0.0
  %1196 = vmatprep.subr.mxu0 0.0
  %1197 = vmatpush1.msra.mxu0 0.0
  %1198 = vmatprep.subr.mxu0 0.0
  %1199 = vmatpush1.msra.mxu0 0.0
  %1200 = vmatprep.subr.mxu0 0.0
  %1201 = vmatpush1.msra.mxu0 0.0
  %1202 = vmatprep.subr.mxu0 0.0
  %1203 = vmatpush1.msra.mxu0 0.0
  %1204 = vmatprep.subr.mxu0 0.0
  %1205 = vmatpush1.msra.mxu0 0.0
  %1206 = vmatprep.subr.mxu0 0.0
  %1207 = vmatpush1.msra.mxu0 0.0
  %1208 = vmatprep.subr.mxu0 0.0
  %1209 = vmatpush1.msra.mxu0 0.0
  %1210 = vmatprep.subr.mxu0 0.0
  %1211 = vmatpush1.msra.mxu0 0.0
  %1212 = vmatprep.subr.mxu0 0.0
  %1213 = vmatpush1.msra.mxu0 0.0
  %1214 = vmatprep.subr.mxu0 0.0
  %1215 = vmatpush1.msra.mxu0 0.0
  %1216 = vmatprep.subr.mxu0 0.0
  %1217 = vmatpush1.msra.mxu0 0.0
  %1218 = vmatprep.subr.mxu0 0.0
  %1219 = vmatpush1.msra.mxu0 0.0
  %1220 = vmatprep.subr.mxu0 0.0
  %1221 = vmatpush1.msra.mxu0 0.0
  %1222 = vmatprep.subr.mxu0 0.0
  %1223 = vmatpush1.msra.mxu0 0.0
  %1224 = vmatprep.subr.mxu0 0.0
  %1225 = vmatpush1.msra.mxu0 0.0
  %1226 = vmatprep.subr.mxu0 0.0
  %1227 = vmatpush1.msra.mxu0 0.0
  %1228 = vmatprep.subr.mxu0 0.0
  %1229 = vmatpush1.msra.mxu0 0.0
  %1230 = vmatprep.subr.mxu0 0.0
  %1231 = vmatpush1.msra.mxu0 0.0
  %1232 = vmatprep.subr.mxu0 0.0
  %1233 = vmatpush1.msra.mxu0 0.0
  %1234 = vmatprep.mubr.f32.mxu0 0.0
  %1235 = vmatmul.mubr.f32.gmra.mrb[0].mxu0 %v450
  %v1236 = vpop.f32.mrb[0].mxu0
  %v1237 = vadd.f32 %v1163, %v1236
  %v1238 = vpop.f32.mrb[0].mxu0
  %1239 = vmatprep.mubr.f32.mxu0 0.0
  %1240 = vmatmul.mubr.f32.gmra.mrb[0].mxu0 %v551
  %v1241 = vpop.f32.mrb[0].mxu0
  %v1242 = vadd.f32 %v1163, %v1241
  %v1243 = vpop.f32.mrb[0].mxu0
  %1244 = vmatprep.mubr.f32.mxu0 0.0
  %1245 = vmatmul.mubr.f32.gmra.mrb[0].mxu0 %v652
  %v1246 = vpop.f32.mrb[0].mxu0
  %v1247 = vadd.f32 %v1163, %v1246
  %v1248 = vpop.f32.mrb[0].mxu0
  %1249 = vmatprep.mubr.f32.mxu0 0.0
  %1250 = vmatmul.mubr.f32.gmra.mrb[0].mxu0 %v753
  %v1251 = vpop.f32.mrb[0].mxu0
  %v1252 = vadd.f32 %v1163, %v1251
  %v1253 = vpop.f32.mrb[0].mxu0
  %1254 = vmatprep.mubr.f32.mxu0 0.0
  %1255 = vmatmul.mubr.f32.gmra.mrb[0].mxu0 %v854
  %v1256 = vpop.f32.mrb[0].mxu0
  %v1257 = vadd.f32 %v1163, %v1256
  %v1258 = vpop.f32.mrb[0].mxu0
  %1259 = vmatprep.mubr.f32.mxu0 0.0
  %1260 = vmatmul.mubr.f32.gmra.mrb[0].mxu0 %v955
  %v1261 = vpop.f32.mrb[0].mxu0
  %v1262 = vadd.f32 %v1163, %v1261
  %v1263 = vpop.f32.mrb[0].mxu0
  %1264 = vmatprep.mubr.f32.mxu0 0.0
  %1265 = vmatmul.mubr.f32.gmra.mrb[0].mxu0 %v1056
  %v1266 = vpop.f32.mrb[0].mxu0
  %v1267 = vadd.f32 %v1163, %v1266
  %v1268 = vpop.f32.mrb[0].mxu0
  %1269 = vmatprep.mubr.f32.mxu0 0.0
  %1270 = vmatmul.mubr.f32.gmra.mrb[0].mxu0 %v1168
  %v1271 = vpop.f32.mrb[0].mxu0
  %v1272 = vadd.f32 %v1163, %v1271
  %v1273 = vpop.f32.mrb[0].mxu0
  %1274 = vdwg.mxu0
  %vm1275 = vcmask 31744
  %1276 = vst.msk [vmem:[%s10] sm:$0xff] %vm1275, %v1237
  %1277 = vst.msk [vmem:[%s10 + $0x8] sm:$0xff] %vm1275, %v1242
  %1278 = vst.msk [vmem:[%s10 + $0x10] sm:$0xff] %vm1275, %v1247
  %1279 = vst.msk [vmem:[%s10 + $0x18] sm:$0xff] %vm1275, %v1252
  %1280 = vst.msk [vmem:[%s10 + $0x20] sm:$0xff] %vm1275, %v1257
  %1281 = vst.msk [vmem:[%s10 + $0x28] sm:$0xff] %vm1275, %v1262
  %1282 = vst.msk [vmem:[%s10 + $0x30] sm:$0xff] %vm1275, %v1267
  %1283 = vst.msk [vmem:[%s10 + $0x38] sm:$0xff] %vm1275, %v1272
  %1285 = vst.msk [vmem:[%s11] sm:$0xff] %vm203, %v1167
  // Predicated region
  $region42: #{_actor_forward_impl.1} parent=0 // pred_check
    _
  $region43: #{_actor_forward_impl.1} parent=0 // pred_check_branch
    %1287 = sbr.rel (0) target = $region45
  $region44: #{_actor_forward_impl.1} parent=0 // pred_region
    _
  $region45: #{_actor_forward_impl.1} parent=0 // pred_fallthru
    _
  // Predicated region
  $region46: #{_actor_forward_impl.1} parent=0 // pred_check
    _
  $region47: #{_actor_forward_impl.1} parent=0 // pred_check_branch
    %1289 = sbr.rel (0) target = $region49
  $region48: #{_actor_forward_impl.1} parent=0 // pred_region
    _
  $region49: #{_actor_forward_impl.1} parent=0 // pred_fallthru
    _
  // Predicated region
  $region50: #{_actor_forward_impl.1} parent=0 // pred_check
    _
  $region51: #{_actor_forward_impl.1} parent=0 // pred_check_branch
    %1291 = sbr.rel (0) target = $region53
  $region52: #{_actor_forward_impl.1} parent=0 // pred_region
    _
  $region53: #{_actor_forward_impl.1} parent=0 // pred_fallthru
    _
  // Predicated region
  $region54: #{_actor_forward_impl.1} parent=0 // pred_check
    _
  $region55: #{_actor_forward_impl.1} parent=0 // pred_check_branch
    %1293 = sbr.rel (0) target = $region57
  $region56: #{_actor_forward_impl.1} parent=0 // pred_region
    _
  $region57: #{_actor_forward_impl.1} parent=0 // pred_fallthru
    _

</llo_original>
